<compile_context>
chip_gen: v7x
topology: tpu7x:2x2x1
jax: 0.10.0
libtpu: 0.0.40
codegen_flags: <defaults>
</compile_context>

<pallas_src>
import math
from functools import partial

import jax
import jax.numpy as jnp
from jax import lax
from jax.experimental import pallas as pl
from jax.experimental.pallas import tpu as pltpu


# ---------------------------------------------------------------------------
# Kernel 1: fused bidirectional LSTM + output Linear, one grid step per encoder
# ---------------------------------------------------------------------------
def _bilstm_proj_kernel(x_ref, w_in_ref, b_ref, w_hh_ref, wp_ref, bp_ref,
                        out_ref, seq_ref, *, T, B, H):
    """Per grid step i (i-th encoder):
       x_ref    : (1, T*B, Cin)   time-major flattened input (row = t*B + b)
       w_in_ref : (1, Cin, 16H)   [fwd-gate block (8H) | bwd-gate block (8H)];
                                  inside each block columns are gate-major,
                                  direction-interleaved: [i_f i_b f_f f_b g_f g_b o_f o_b]
                                  with the "other" direction's slots zeroed.
       b_ref    : (1, 1, 16H)     folded b_ih + b_hh in the same layout
       w_hh_ref : (1, 2H, 8H)     block-diagonal hidden->gate weights
       wp_ref   : (1, 2H, H)      output Linear weight (transposed)
       bp_ref   : (1, 1, H)       output Linear bias
       out_ref  : (1, T*B, H)     projected encoder output (time-major rows)
       seq_ref  : (T*B, 2H)       VMEM scratch holding [h_fwd | h_bwd] per row
    """
    G = 8 * H                       # combined (both directions, 4 gates) width

    x = x_ref[0]                    # (T*B, Cin)
    w_in = w_in_ref[0]              # (Cin, 2G)
    w_hh = w_hh_ref[0]              # (2H, G)
    bias = b_ref[0]                 # (1, 2G)

    # Hoisted input projection: one lane-dense MXU call for all timesteps.
    igs = jnp.dot(x, w_in, preferred_element_type=jnp.float32) + bias   # (T*B, 2G)
    ig_f = igs[:, :G]               # forward-direction pre-activations (time t rows)
    ig_b = igs[:, G:]               # backward-direction pre-activations

    # Recurrence, fully unrolled (T is small & static).  State is kept packed
    # as [fwd | bwd] along lanes so each step needs exactly one matmul.
    h = jnp.zeros((B, 2 * H), jnp.float32)   # [h_fwd | h_bwd]
    c = jnp.zeros((B, 2 * H), jnp.float32)   # [c_fwd | c_bwd]
    for s in range(T):
        tb = T - 1 - s              # timestep consumed by the backward direction
        hh = jnp.dot(h, w_hh, preferred_element_type=jnp.float32)        # (B, G)
        g_all = (ig_f[s * B:(s + 1) * B, :]
                 + ig_b[tb * B:(tb + 1) * B, :]
                 + hh)                                                   # (B, G)
        # gate-major layout: [i | f | g | o], each 2H wide ([fwd | bwd])
        i_g = jax.nn.sigmoid(g_all[:, 0 * 2 * H:1 * 2 * H])
        f_g = jax.nn.sigmoid(g_all[:, 1 * 2 * H:2 * 2 * H])
        g_g = jnp.tanh(g_all[:, 2 * 2 * H:3 * 2 * H])
        o_g = jax.nn.sigmoid(g_all[:, 3 * 2 * H:4 * 2 * H])
        c = f_g * c + i_g * g_g
        h = o_g * jnp.tanh(c)
        # scatter the two directions to their own timestep rows
        seq_ref[s * B:(s + 1) * B, 0:H] = h[:, 0:H]             # fwd -> time s
        seq_ref[tb * B:(tb + 1) * B, H:2 * H] = h[:, H:2 * H]   # bwd -> time T-1-s

    # Fused output Linear: one matmul over all (t, b) rows, one dense store.
    seq = seq_ref[...]                                          # (T*B, 2H)
    proj = jnp.dot(seq, wp_ref[0], preferred_element_type=jnp.float32) + bp_ref[0]
    out_ref[0] = proj


# ---------------------------------------------------------------------------
# Kernel 2: scaled dot-product attention over the whole batch at once
# ---------------------------------------------------------------------------
def _attention_kernel(enc_ref, o_ref, *, B):
    """enc_ref: (3, T*B, H)  projected q/k/v, rows are (t, b) time-major.
       o_ref  : (T*B, H)     weighted values, same row layout."""
    q = enc_ref[0]
    k = enc_ref[1]
    v = enc_ref[2]
    N = q.shape[0]

    # Full (N, N) Gram matrix; cross-batch entries are masked out so the whole
    # computation stays dense 2-D (no per-batch slicing / 3-D dots).
    g = jnp.dot(q, k.T, preferred_element_type=jnp.float32) * (1.0 / math.sqrt(16.0))
    row_b = lax.broadcasted_iota(jnp.int32, (N, N), 0) % B
    col_b = lax.broadcasted_iota(jnp.int32, (N, N), 1) % B
    energy = jnp.where(row_b == col_b, g, -1e30)

    # stable softmax over the last dim
    m = jnp.max(energy, axis=-1, keepdims=True)
    p = jnp.exp(energy - m)
    denom = jnp.sum(p, axis=-1, keepdims=True)
    attn = p * pl.reciprocal(denom, approx=True)

    o_ref[...] = jnp.dot(attn, v, preferred_element_type=jnp.float32)


# ---------------------------------------------------------------------------
# Forward wrapper
# ---------------------------------------------------------------------------
def f_att_forward(q, k, v, packed):
    """q, k, v: (B, T, Cin) batch-first.  Returns (B, T, H)."""
    w_in, bias, w_hh, wp, bp = packed       # each stacked over the 3 encoders
    B, T, Cin = q.shape
    H = wp.shape[-1]
    N = T * B

    # stack q/k/v encoders and flatten to time-major rows (row = t*B + b)
    x = jnp.stack([q, k, v], axis=0)                       # (3, B, T, Cin)
    x = jnp.transpose(x, (0, 2, 1, 3)).reshape(3, N, Cin)  # (3, T*B, Cin)

    enc = pl.pallas_call(
        partial(_bilstm_proj_kernel, T=T, B=B, H=H),
        grid=(3,),
        in_specs=[
            pl.BlockSpec((1, N, Cin), lambda i: (i, 0, 0)),
            pl.BlockSpec((1, Cin, 16 * H), lambda i: (i, 0, 0)),
            pl.BlockSpec((1, 1, 16 * H), lambda i: (i, 0, 0)),
            pl.BlockSpec((1, 2 * H, 8 * H), lambda i: (i, 0, 0)),
            pl.BlockSpec((1, 2 * H, H), lambda i: (i, 0, 0)),
            pl.BlockSpec((1, 1, H), lambda i: (i, 0, 0)),
        ],
        out_specs=pl.BlockSpec((1, N, H), lambda i: (i, 0, 0)),
        out_shape=jax.ShapeDtypeStruct((3, N, H), jnp.float32),
        scratch_shapes=[pltpu.VMEM((N, 2 * H), jnp.float32)],
        compiler_params=pltpu.CompilerParams(dimension_semantics=("parallel",)),
    )(x, w_in, bias, w_hh, wp, bp)

    out_flat = pl.pallas_call(
        partial(_attention_kernel, B=B),
        out_shape=jax.ShapeDtypeStruct((N, H), jnp.float32),
    )(enc)

    # back to the module's (B, T, H) output layout
    return jnp.transpose(out_flat.reshape(T, B, H), (1, 0, 2))


# ---------------------------------------------------------------------------
# Parameter init (PyTorch-style raw params) + packing into kernel layout
# ---------------------------------------------------------------------------
def init_lstm_raw(key, c_in, hidden):
    """PyTorch layout: w_ih (2,4H,Cin), w_hh (2,4H,H), b_ih (2,4H), b_hh (2,4H)."""
    kk = 1.0 / math.sqrt(hidden)
    ks = jax.random.split(key, 4)
    w_ih = jax.random.uniform(ks[0], (2, 4 * hidden, c_in), jnp.float32, -kk, kk)
    w_hh = jax.random.uniform(ks[1], (2, 4 * hidden, hidden), jnp.float32, -kk, kk)
    b_ih = jax.random.uniform(ks[2], (2, 4 * hidden), jnp.float32, -kk, kk)
    b_hh = jax.random.uniform(ks[3], (2, 4 * hidden), jnp.float32, -kk, kk)
    return w_ih, w_hh, b_ih, b_hh


def init_linear_raw(key, f_in, f_out):
    kk = 1.0 / math.sqrt(f_in)
    kw, kb = jax.random.split(key)
    w = jax.random.uniform(kw, (f_out, f_in), jnp.float32, -kk, kk)
    b = jax.random.uniform(kb, (f_out,), jnp.float32, -kk, kk)
    return w, b


def _interleave_cols(mat_f, mat_b, H):
    """(R,4H) PyTorch-gate-order -> (R,8H) gate-major, direction-interleaved
       columns [i_f i_b f_f f_b g_f g_b o_f o_b]; None -> zeros for that slot."""
    R = mat_f.shape[0] if mat_f is not None else mat_b.shape[0]
    z = jnp.zeros((R, 4, H), jnp.float32)
    a = mat_f.reshape(R, 4, H) if mat_f is not None else z
    b = mat_b.reshape(R, 4, H) if mat_b is not None else z
    return jnp.stack([a, b], axis=2).reshape(R, 8 * H)


def _pack_one(lstm_raw, lin_raw, H):
    w_ih, w_hh, b_ih, b_hh = lstm_raw
    w_lin, b_lin = lin_raw

    wif_t, wib_t = w_ih[0].T, w_ih[1].T                     # (Cin, 4H)
    w_in = jnp.concatenate(
        [_interleave_cols(wif_t, None, H), _interleave_cols(None, wib_t, H)], axis=1)

    bf = (b_ih[0] + b_hh[0])[None, :]                       # (1, 4H)
    bb = (b_ih[1] + b_hh[1])[None, :]
    bias = jnp.concatenate(
        [_interleave_cols(bf, None, H), _interleave_cols(None, bb, H)], axis=1)

    whf_t, whb_t = w_hh[0].T, w_hh[1].T                     # (H, 4H)
    w_hh_blk = jnp.concatenate(
        [_interleave_cols(whf_t, None, H), _interleave_cols(None, whb_t, H)], axis=0)

    return w_in, bias, w_hh_blk, w_lin.T, b_lin[None, :]


def pack_params(raw, H):
    (q_lstm, k_lstm, v_lstm, q_lin, k_lin, v_lin) = raw
    per = [_pack_one(l, p, H) for l, p in
           ((q_lstm, q_lin), (k_lstm, k_lin), (v_lstm, v_lin))]
    return tuple(jnp.stack([p[j] for p in per]) for j in range(5))


# ---------------------------------------------------------------------------
# Pure-JAX reference (same math, from the raw PyTorch-layout params)
# ---------------------------------------------------------------------------
def _ref_bilstm(x_btc, w_ih, w_hh, b_ih, b_hh):
    B, T, _ = x_btc.shape
    H = w_hh.shape[-1]
    x = jnp.transpose(x_btc, (1, 0, 2))

    def cell(x_t, h, c, wi, wh, bi, bh):
        g = x_t @ wi.T + h @ wh.T + bi + bh
        i = jax.nn.sigmoid(g[:, :H]); f = jax.nn.sigmoid(g[:, H:2 * H])
        gg = jnp.tanh(g[:, 2 * H:3 * H]); o = jax.nn.sigmoid(g[:, 3 * H:])
        c = f * c + i * gg
        return o * jnp.tanh(c), c

    hf = cf = hb = cb = jnp.zeros((B, H), jnp.float32)
    out_f, out_b = [None] * T, [None] * T
    for t in range(T):
        hf, cf = cell(x[t], hf, cf, w_ih[0], w_hh[0], b_ih[0], b_hh[0])
        out_f[t] = hf
        tb = T - 1 - t
        hb, cb = cell(x[tb], hb, cb, w_ih[1], w_hh[1], b_ih[1], b_hh[1])
        out_b[tb] = hb
    out = jnp.concatenate([jnp.stack(out_f), jnp.stack(out_b)], axis=-1)  # (T,B,2H)
    return jnp.transpose(out, (1, 0, 2))


def _ref_forward(q, k, v, raw):
    (q_lstm, k_lstm, v_lstm, q_lin, k_lin, v_lin) = raw
    ql = _ref_bilstm(q, *q_lstm) @ q_lin[0].T + q_lin[1]
    kl = _ref_bilstm(k, *k_lstm) @ k_lin[0].T + k_lin[1]
    vl = _ref_bilstm(v, *v_lstm) @ v_lin[0].T + v_lin[1]
    energy = jnp.einsum('btf,bsf->bts', ql, kl) / math.sqrt(16.0)
    attn = jax.nn.softmax(energy, axis=-1)
    return jnp.einsum('bts,bsh->bth', attn, vl)


# ---------------------------------------------------------------------------
if __name__ == "__main__":
    IN_CH, OUT_CH = 64, 16          # module defaults
    B, T = 2, 8

    root = jax.random.PRNGKey(0)
    pk = jax.random.split(root, 7)
    raw = (
        init_lstm_raw(pk[0], IN_CH, OUT_CH),
        init_lstm_raw(pk[1], IN_CH, OUT_CH),
        init_lstm_raw(pk[2], IN_CH, OUT_CH),
        init_linear_raw(pk[3], 2 * OUT_CH, OUT_CH),
        init_linear_raw(pk[4], 2 * OUT_CH, OUT_CH),
        init_linear_raw(pk[5], 2 * OUT_CH, OUT_CH),
    )
    packed = pack_params(raw, OUT_CH)

    dk = jax.random.split(pk[6], 3)
    q = jax.random.normal(dk[0], (B, T, IN_CH), jnp.float32)
    k = jax.random.normal(dk[1], (B, T, IN_CH), jnp.float32)
    v = jax.random.normal(dk[2], (B, T, IN_CH), jnp.float32)

    out = jax.jit(f_att_forward)(q, k, v, packed)
    out = jax.block_until_ready(out)

    ref = _ref_forward(q, k, v, raw)
    assert out.shape == (B, T, OUT_CH)
    assert jnp.allclose(out, ref, rtol=2e-3, atol=2e-3), "mismatch vs pure-JAX reference"

    print("KERNEL_OK")
</pallas_src>

<mosaic_0001>
module attributes {stable_mosaic.version = 11 : i64} {
  func.func @_bilstm_proj_kernel(%arg0: i32, %arg1: memref<1x16x64xf32, #tpu.memory_space<vmem>>, %arg2: memref<1x64x256xf32, #tpu.memory_space<vmem>>, %arg3: memref<1x1x256xf32, #tpu.memory_space<vmem>>, %arg4: memref<1x32x128xf32, #tpu.memory_space<vmem>>, %arg5: memref<1x32x16xf32, #tpu.memory_space<vmem>>, %arg6: memref<1x1x16xf32, #tpu.memory_space<vmem>>, %arg7: memref<1x16x16xf32, #tpu.memory_space<vmem>>, %arg8: memref<16x32xf32, #tpu.memory_space<vmem>>) attributes {dimension_semantics = [#tpu.dimension_semantics<parallel>], iteration_bounds = array<i64: 3>, scalar_prefetch = 0 : i64, scratch_operands = 1 : i64, tpu.core_type = #tpu.core_type<tc>, window_params = [{transform_indices = @transform_0, window_bounds = array<i64: 1, 16, 64>}, {transform_indices = @transform_1, window_bounds = array<i64: 1, 64, 256>}, {transform_indices = @transform_2, window_bounds = array<i64: 1, 1, 256>}, {transform_indices = @transform_3, window_bounds = array<i64: 1, 32, 128>}, {transform_indices = @transform_4, window_bounds = array<i64: 1, 32, 16>}, {transform_indices = @transform_5, window_bounds = array<i64: 1, 1, 16>}, {transform_indices = @transform_6, window_bounds = array<i64: 1, 16, 16>}]} {
    %c0 = arith.constant 0 : index
    %c0_0 = arith.constant 0 : index
    %c0_1 = arith.constant 0 : index
    %0 = vector.load %arg1[%c0, %c0_0, %c0_1] : memref<1x16x64xf32, #tpu.memory_space<vmem>>, vector<1x16x64xf32>
    %1 = vector.shape_cast %0 : vector<1x16x64xf32> to vector<16x64xf32>
    %c0_2 = arith.constant 0 : index
    %c0_3 = arith.constant 0 : index
    %c0_4 = arith.constant 0 : index
    %2 = vector.load %arg2[%c0_2, %c0_3, %c0_4] : memref<1x64x256xf32, #tpu.memory_space<vmem>>, vector<1x64x256xf32>
    %3 = vector.shape_cast %2 : vector<1x64x256xf32> to vector<64x256xf32>
    %c0_5 = arith.constant 0 : index
    %c0_6 = arith.constant 0 : index
    %c0_7 = arith.constant 0 : index
    %4 = vector.load %arg4[%c0_5, %c0_6, %c0_7] : memref<1x32x128xf32, #tpu.memory_space<vmem>>, vector<1x32x128xf32>
    %5 = vector.shape_cast %4 : vector<1x32x128xf32> to vector<32x128xf32>
    %c0_8 = arith.constant 0 : index
    %c0_9 = arith.constant 0 : index
    %c0_10 = arith.constant 0 : index
    %6 = vector.load %arg3[%c0_8, %c0_9, %c0_10] : memref<1x1x256xf32, #tpu.memory_space<vmem>>, vector<1x1x256xf32>
    %7 = vector.shape_cast %6 : vector<1x1x256xf32> to vector<1x256xf32>
    %cst = arith.constant dense<0.000000e+00> : vector<16x256xf32>
    %8 = tpu.matmul %1, %3, %cst {dimension_numbers = #tpu.dot_dimension_numbers<[1], [0], [0], [1], [0, 0, 1, 1], [], []>} : vector<16x64xf32>, vector<64x256xf32>, vector<16x256xf32> -> vector<16x256xf32>
    %9 = vector.broadcast %7 : vector<1x256xf32> to vector<16x256xf32>
    %10 = arith.addf %8, %9 : vector<16x256xf32>
    %11 = vector.extract_strided_slice %10 {offsets = [0, 0], sizes = [16, 128], strides = [1, 1]} : vector<16x256xf32> to vector<16x128xf32>
    %12 = vector.extract_strided_slice %10 {offsets = [0, 128], sizes = [16, 128], strides = [1, 1]} : vector<16x256xf32> to vector<16x128xf32>
    %cst_11 = arith.constant 0.000000e+00 : f32
    %13 = vector.broadcast %cst_11 : f32 to vector<2x32xf32>
    %cst_12 = arith.constant 0.000000e+00 : f32
    %14 = vector.broadcast %cst_12 : f32 to vector<2x32xf32>
    %cst_13 = arith.constant dense<0.000000e+00> : vector<2x128xf32>
    %15 = tpu.matmul %13, %5, %cst_13 {dimension_numbers = #tpu.dot_dimension_numbers<[1], [0], [0], [1], [0, 0, 1, 1], [], []>} : vector<2x32xf32>, vector<32x128xf32>, vector<2x128xf32> -> vector<2x128xf32>
    %16 = vector.extract_strided_slice %11 {offsets = [0, 0], sizes = [2, 128], strides = [1, 1]} : vector<16x128xf32> to vector<2x128xf32>
    %17 = vector.extract_strided_slice %12 {offsets = [14, 0], sizes = [2, 128], strides = [1, 1]} : vector<16x128xf32> to vector<2x128xf32>
    %18 = arith.addf %16, %17 : vector<2x128xf32>
    %19 = arith.addf %18, %15 : vector<2x128xf32>
    %20 = vector.extract_strided_slice %19 {offsets = [0, 0], sizes = [2, 32], strides = [1, 1]} : vector<2x128xf32> to vector<2x32xf32>
    %21 = arith.negf %20 : vector<2x32xf32>
    %22 = math.exp %21 : vector<2x32xf32>
    %cst_14 = arith.constant 1.000000e+00 : f32
    %23 = vector.broadcast %cst_14 : f32 to vector<2x32xf32>
    %24 = arith.addf %23, %22 : vector<2x32xf32>
    %25 = arith.divf %23, %24 : vector<2x32xf32>
    %26 = vector.extract_strided_slice %19 {offsets = [0, 32], sizes = [2, 32], strides = [1, 1]} : vector<2x128xf32> to vector<2x32xf32>
    %27 = arith.negf %26 : vector<2x32xf32>
    %28 = math.exp %27 : vector<2x32xf32>
    %cst_15 = arith.constant 1.000000e+00 : f32
    %29 = vector.broadcast %cst_15 : f32 to vector<2x32xf32>
    %30 = arith.addf %29, %28 : vector<2x32xf32>
    %31 = arith.divf %29, %30 : vector<2x32xf32>
    %32 = vector.extract_strided_slice %19 {offsets = [0, 64], sizes = [2, 32], strides = [1, 1]} : vector<2x128xf32> to vector<2x32xf32>
    %33 = math.tanh %32 : vector<2x32xf32>
    %34 = vector.extract_strided_slice %19 {offsets = [0, 96], sizes = [2, 32], strides = [1, 1]} : vector<2x128xf32> to vector<2x32xf32>
    %35 = arith.negf %34 : vector<2x32xf32>
    %36 = math.exp %35 : vector<2x32xf32>
    %cst_16 = arith.constant 1.000000e+00 : f32
    %37 = vector.broadcast %cst_16 : f32 to vector<2x32xf32>
    %38 = arith.addf %37, %36 : vector<2x32xf32>
    %39 = arith.divf %37, %38 : vector<2x32xf32>
    %40 = arith.mulf %31, %14 : vector<2x32xf32>
    %41 = arith.mulf %25, %33 : vector<2x32xf32>
    %42 = arith.addf %40, %41 : vector<2x32xf32>
    %43 = math.tanh %42 : vector<2x32xf32>
    %44 = arith.mulf %39, %43 : vector<2x32xf32>
    %45 = vector.extract_strided_slice %44 {offsets = [0, 0], sizes = [2, 16], strides = [1, 1]} : vector<2x32xf32> to vector<2x16xf32>
    %c0_17 = arith.constant 0 : index
    %c0_18 = arith.constant 0 : index
    %46 = vector.load %arg8[%c0_17, %c0_18] : memref<16x32xf32, #tpu.memory_space<vmem>>, vector<2x16xf32>
    tpu.vector_store %arg8[%c0_17, %c0_18], %45 {strides = array<i32>} : memref<16x32xf32, #tpu.memory_space<vmem>>, vector<2x16xf32>,
    %47 = vector.extract_strided_slice %44 {offsets = [0, 16], sizes = [2, 16], strides = [1, 1]} : vector<2x32xf32> to vector<2x16xf32>
    %c14 = arith.constant 14 : index
    %c16 = arith.constant 16 : index
    %48 = vector.load %arg8[%c14, %c16] : memref<16x32xf32, #tpu.memory_space<vmem>>, vector<2x16xf32>
    tpu.vector_store %arg8[%c14, %c16], %47 {strides = array<i32>} : memref<16x32xf32, #tpu.memory_space<vmem>>, vector<2x16xf32>,
    %cst_19 = arith.constant dense<0.000000e+00> : vector<2x128xf32>
    %49 = tpu.matmul %44, %5, %cst_19 {dimension_numbers = #tpu.dot_dimension_numbers<[1], [0], [0], [1], [0, 0, 1, 1], [], []>} : vector<2x32xf32>, vector<32x128xf32>, vector<2x128xf32> -> vector<2x128xf32>
    %50 = vector.extract_strided_slice %11 {offsets = [2, 0], sizes = [2, 128], strides = [1, 1]} : vector<16x128xf32> to vector<2x128xf32>
    %51 = vector.extract_strided_slice %12 {offsets = [12, 0], sizes = [2, 128], strides = [1, 1]} : vector<16x128xf32> to vector<2x128xf32>
    %52 = arith.addf %50, %51 : vector<2x128xf32>
    %53 = arith.addf %52, %49 : vector<2x128xf32>
    %54 = vector.extract_strided_slice %53 {offsets = [0, 0], sizes = [2, 32], strides = [1, 1]} : vector<2x128xf32> to vector<2x32xf32>
    %55 = arith.negf %54 : vector<2x32xf32>
    %56 = math.exp %55 : vector<2x32xf32>
    %cst_20 = arith.constant 1.000000e+00 : f32
    %57 = vector.broadcast %cst_20 : f32 to vector<2x32xf32>
    %58 = arith.addf %57, %56 : vector<2x32xf32>
    %59 = arith.divf %57, %58 : vector<2x32xf32>
    %60 = vector.extract_strided_slice %53 {offsets = [0, 32], sizes = [2, 32], strides = [1, 1]} : vector<2x128xf32> to vector<2x32xf32>
    %61 = arith.negf %60 : vector<2x32xf32>
    %62 = math.exp %61 : vector<2x32xf32>
    %cst_21 = arith.constant 1.000000e+00 : f32
    %63 = vector.broadcast %cst_21 : f32 to vector<2x32xf32>
    %64 = arith.addf %63, %62 : vector<2x32xf32>
    %65 = arith.divf %63, %64 : vector<2x32xf32>
    %66 = vector.extract_strided_slice %53 {offsets = [0, 64], sizes = [2, 32], strides = [1, 1]} : vector<2x128xf32> to vector<2x32xf32>
    %67 = math.tanh %66 : vector<2x32xf32>
    %68 = vector.extract_strided_slice %53 {offsets = [0, 96], sizes = [2, 32], strides = [1, 1]} : vector<2x128xf32> to vector<2x32xf32>
    %69 = arith.negf %68 : vector<2x32xf32>
    %70 = math.exp %69 : vector<2x32xf32>
    %cst_22 = arith.constant 1.000000e+00 : f32
    %71 = vector.broadcast %cst_22 : f32 to vector<2x32xf32>
    %72 = arith.addf %71, %70 : vector<2x32xf32>
    %73 = arith.divf %71, %72 : vector<2x32xf32>
    %74 = arith.mulf %65, %42 : vector<2x32xf32>
    %75 = arith.mulf %59, %67 : vector<2x32xf32>
    %76 = arith.addf %74, %75 : vector<2x32xf32>
    %77 = math.tanh %76 : vector<2x32xf32>
    %78 = arith.mulf %73, %77 : vector<2x32xf32>
    %79 = vector.extract_strided_slice %78 {offsets = [0, 0], sizes = [2, 16], strides = [1, 1]} : vector<2x32xf32> to vector<2x16xf32>
    %c2 = arith.constant 2 : index
    %c0_23 = arith.constant 0 : index
    %80 = vector.load %arg8[%c2, %c0_23] : memref<16x32xf32, #tpu.memory_space<vmem>>, vector<2x16xf32>
    tpu.vector_store %arg8[%c2, %c0_23], %79 {strides = array<i32>} : memref<16x32xf32, #tpu.memory_space<vmem>>, vector<2x16xf32>,
    %81 = vector.extract_strided_slice %78 {offsets = [0, 16], sizes = [2, 16], strides = [1, 1]} : vector<2x32xf32> to vector<2x16xf32>
    %c12 = arith.constant 12 : index
    %c16_24 = arith.constant 16 : index
    %82 = vector.load %arg8[%c12, %c16_24] : memref<16x32xf32, #tpu.memory_space<vmem>>, vector<2x16xf32>
    tpu.vector_store %arg8[%c12, %c16_24], %81 {strides = array<i32>} : memref<16x32xf32, #tpu.memory_space<vmem>>, vector<2x16xf32>,
    %cst_25 = arith.constant dense<0.000000e+00> : vector<2x128xf32>
    %83 = tpu.matmul %78, %5, %cst_25 {dimension_numbers = #tpu.dot_dimension_numbers<[1], [0], [0], [1], [0, 0, 1, 1], [], []>} : vector<2x32xf32>, vector<32x128xf32>, vector<2x128xf32> -> vector<2x128xf32>
    %84 = vector.extract_strided_slice %11 {offsets = [4, 0], sizes = [2, 128], strides = [1, 1]} : vector<16x128xf32> to vector<2x128xf32>
    %85 = vector.extract_strided_slice %12 {offsets = [10, 0], sizes = [2, 128], strides = [1, 1]} : vector<16x128xf32> to vector<2x128xf32>
    %86 = arith.addf %84, %85 : vector<2x128xf32>
    %87 = arith.addf %86, %83 : vector<2x128xf32>
    %88 = vector.extract_strided_slice %87 {offsets = [0, 0], sizes = [2, 32], strides = [1, 1]} : vector<2x128xf32> to vector<2x32xf32>
    %89 = arith.negf %88 : vector<2x32xf32>
    %90 = math.exp %89 : vector<2x32xf32>
    %cst_26 = arith.constant 1.000000e+00 : f32
    %91 = vector.broadcast %cst_26 : f32 to vector<2x32xf32>
    %92 = arith.addf %91, %90 : vector<2x32xf32>
    %93 = arith.divf %91, %92 : vector<2x32xf32>
    %94 = vector.extract_strided_slice %87 {offsets = [0, 32], sizes = [2, 32], strides = [1, 1]} : vector<2x128xf32> to vector<2x32xf32>
    %95 = arith.negf %94 : vector<2x32xf32>
    %96 = math.exp %95 : vector<2x32xf32>
    %cst_27 = arith.constant 1.000000e+00 : f32
    %97 = vector.broadcast %cst_27 : f32 to vector<2x32xf32>
    %98 = arith.addf %97, %96 : vector<2x32xf32>
    %99 = arith.divf %97, %98 : vector<2x32xf32>
    %100 = vector.extract_strided_slice %87 {offsets = [0, 64], sizes = [2, 32], strides = [1, 1]} : vector<2x128xf32> to vector<2x32xf32>
    %101 = math.tanh %100 : vector<2x32xf32>
    %102 = vector.extract_strided_slice %87 {offsets = [0, 96], sizes = [2, 32], strides = [1, 1]} : vector<2x128xf32> to vector<2x32xf32>
    %103 = arith.negf %102 : vector<2x32xf32>
    %104 = math.exp %103 : vector<2x32xf32>
    %cst_28 = arith.constant 1.000000e+00 : f32
    %105 = vector.broadcast %cst_28 : f32 to vector<2x32xf32>
    %106 = arith.addf %105, %104 : vector<2x32xf32>
    %107 = arith.divf %105, %106 : vector<2x32xf32>
    %108 = arith.mulf %99, %76 : vector<2x32xf32>
    %109 = arith.mulf %93, %101 : vector<2x32xf32>
    %110 = arith.addf %108, %109 : vector<2x32xf32>
    %111 = math.tanh %110 : vector<2x32xf32>
    %112 = arith.mulf %107, %111 : vector<2x32xf32>
    %113 = vector.extract_strided_slice %112 {offsets = [0, 0], sizes = [2, 16], strides = [1, 1]} : vector<2x32xf32> to vector<2x16xf32>
    %c4 = arith.constant 4 : index
    %c0_29 = arith.constant 0 : index
    %114 = vector.load %arg8[%c4, %c0_29] : memref<16x32xf32, #tpu.memory_space<vmem>>, vector<2x16xf32>
    tpu.vector_store %arg8[%c4, %c0_29], %113 {strides = array<i32>} : memref<16x32xf32, #tpu.memory_space<vmem>>, vector<2x16xf32>,
    %115 = vector.extract_strided_slice %112 {offsets = [0, 16], sizes = [2, 16], strides = [1, 1]} : vector<2x32xf32> to vector<2x16xf32>
    %c10 = arith.constant 10 : index
    %c16_30 = arith.constant 16 : index
    %116 = vector.load %arg8[%c10, %c16_30] : memref<16x32xf32, #tpu.memory_space<vmem>>, vector<2x16xf32>
    tpu.vector_store %arg8[%c10, %c16_30], %115 {strides = array<i32>} : memref<16x32xf32, #tpu.memory_space<vmem>>, vector<2x16xf32>,
    %cst_31 = arith.constant dense<0.000000e+00> : vector<2x128xf32>
    %117 = tpu.matmul %112, %5, %cst_31 {dimension_numbers = #tpu.dot_dimension_numbers<[1], [0], [0], [1], [0, 0, 1, 1], [], []>} : vector<2x32xf32>, vector<32x128xf32>, vector<2x128xf32> -> vector<2x128xf32>
    %118 = vector.extract_strided_slice %11 {offsets = [6, 0], sizes = [2, 128], strides = [1, 1]} : vector<16x128xf32> to vector<2x128xf32>
    %119 = vector.extract_strided_slice %12 {offsets = [8, 0], sizes = [2, 128], strides = [1, 1]} : vector<16x128xf32> to vector<2x128xf32>
    %120 = arith.addf %118, %119 : vector<2x128xf32>
    %121 = arith.addf %120, %117 : vector<2x128xf32>
    %122 = vector.extract_strided_slice %121 {offsets = [0, 0], sizes = [2, 32], strides = [1, 1]} : vector<2x128xf32> to vector<2x32xf32>
    %123 = arith.negf %122 : vector<2x32xf32>
    %124 = math.exp %123 : vector<2x32xf32>
    %cst_32 = arith.constant 1.000000e+00 : f32
    %125 = vector.broadcast %cst_32 : f32 to vector<2x32xf32>
    %126 = arith.addf %125, %124 : vector<2x32xf32>
    %127 = arith.divf %125, %126 : vector<2x32xf32>
    %128 = vector.extract_strided_slice %121 {offsets = [0, 32], sizes = [2, 32], strides = [1, 1]} : vector<2x128xf32> to vector<2x32xf32>
    %129 = arith.negf %128 : vector<2x32xf32>
    %130 = math.exp %129 : vector<2x32xf32>
    %cst_33 = arith.constant 1.000000e+00 : f32
    %131 = vector.broadcast %cst_33 : f32 to vector<2x32xf32>
    %132 = arith.addf %131, %130 : vector<2x32xf32>
    %133 = arith.divf %131, %132 : vector<2x32xf32>
    %134 = vector.extract_strided_slice %121 {offsets = [0, 64], sizes = [2, 32], strides = [1, 1]} : vector<2x128xf32> to vector<2x32xf32>
    %135 = math.tanh %134 : vector<2x32xf32>
    %136 = vector.extract_strided_slice %121 {offsets = [0, 96], sizes = [2, 32], strides = [1, 1]} : vector<2x128xf32> to vector<2x32xf32>
    %137 = arith.negf %136 : vector<2x32xf32>
    %138 = math.exp %137 : vector<2x32xf32>
    %cst_34 = arith.constant 1.000000e+00 : f32
    %139 = vector.broadcast %cst_34 : f32 to vector<2x32xf32>
    %140 = arith.addf %139, %138 : vector<2x32xf32>
    %141 = arith.divf %139, %140 : vector<2x32xf32>
    %142 = arith.mulf %133, %110 : vector<2x32xf32>
    %143 = arith.mulf %127, %135 : vector<2x32xf32>
    %144 = arith.addf %142, %143 : vector<2x32xf32>
    %145 = math.tanh %144 : vector<2x32xf32>
    %146 = arith.mulf %141, %145 : vector<2x32xf32>
    %147 = vector.extract_strided_slice %146 {offsets = [0, 0], sizes = [2, 16], strides = [1, 1]} : vector<2x32xf32> to vector<2x16xf32>
    %c6 = arith.constant 6 : index
    %c0_35 = arith.constant 0 : index
    %148 = vector.load %arg8[%c6, %c0_35] : memref<16x32xf32, #tpu.memory_space<vmem>>, vector<2x16xf32>
    tpu.vector_store %arg8[%c6, %c0_35], %147 {strides = array<i32>} : memref<16x32xf32, #tpu.memory_space<vmem>>, vector<2x16xf32>,
    %149 = vector.extract_strided_slice %146 {offsets = [0, 16], sizes = [2, 16], strides = [1, 1]} : vector<2x32xf32> to vector<2x16xf32>
    %c8 = arith.constant 8 : index
    %c16_36 = arith.constant 16 : index
    %150 = vector.load %arg8[%c8, %c16_36] : memref<16x32xf32, #tpu.memory_space<vmem>>, vector<2x16xf32>
    tpu.vector_store %arg8[%c8, %c16_36], %149 {strides = array<i32>} : memref<16x32xf32, #tpu.memory_space<vmem>>, vector<2x16xf32>,
    %cst_37 = arith.constant dense<0.000000e+00> : vector<2x128xf32>
    %151 = tpu.matmul %146, %5, %cst_37 {dimension_numbers = #tpu.dot_dimension_numbers<[1], [0], [0], [1], [0, 0, 1, 1], [], []>} : vector<2x32xf32>, vector<32x128xf32>, vector<2x128xf32> -> vector<2x128xf32>
    %152 = vector.extract_strided_slice %11 {offsets = [8, 0], sizes = [2, 128], strides = [1, 1]} : vector<16x128xf32> to vector<2x128xf32>
    %153 = vector.extract_strided_slice %12 {offsets = [6, 0], sizes = [2, 128], strides = [1, 1]} : vector<16x128xf32> to vector<2x128xf32>
    %154 = arith.addf %152, %153 : vector<2x128xf32>
    %155 = arith.addf %154, %151 : vector<2x128xf32>
    %156 = vector.extract_strided_slice %155 {offsets = [0, 0], sizes = [2, 32], strides = [1, 1]} : vector<2x128xf32> to vector<2x32xf32>
    %157 = arith.negf %156 : vector<2x32xf32>
    %158 = math.exp %157 : vector<2x32xf32>
    %cst_38 = arith.constant 1.000000e+00 : f32
    %159 = vector.broadcast %cst_38 : f32 to vector<2x32xf32>
    %160 = arith.addf %159, %158 : vector<2x32xf32>
    %161 = arith.divf %159, %160 : vector<2x32xf32>
    %162 = vector.extract_strided_slice %155 {offsets = [0, 32], sizes = [2, 32], strides = [1, 1]} : vector<2x128xf32> to vector<2x32xf32>
    %163 = arith.negf %162 : vector<2x32xf32>
    %164 = math.exp %163 : vector<2x32xf32>
    %cst_39 = arith.constant 1.000000e+00 : f32
    %165 = vector.broadcast %cst_39 : f32 to vector<2x32xf32>
    %166 = arith.addf %165, %164 : vector<2x32xf32>
    %167 = arith.divf %165, %166 : vector<2x32xf32>
    %168 = vector.extract_strided_slice %155 {offsets = [0, 64], sizes = [2, 32], strides = [1, 1]} : vector<2x128xf32> to vector<2x32xf32>
    %169 = math.tanh %168 : vector<2x32xf32>
    %170 = vector.extract_strided_slice %155 {offsets = [0, 96], sizes = [2, 32], strides = [1, 1]} : vector<2x128xf32> to vector<2x32xf32>
    %171 = arith.negf %170 : vector<2x32xf32>
    %172 = math.exp %171 : vector<2x32xf32>
    %cst_40 = arith.constant 1.000000e+00 : f32
    %173 = vector.broadcast %cst_40 : f32 to vector<2x32xf32>
    %174 = arith.addf %173, %172 : vector<2x32xf32>
    %175 = arith.divf %173, %174 : vector<2x32xf32>
    %176 = arith.mulf %167, %144 : vector<2x32xf32>
    %177 = arith.mulf %161, %169 : vector<2x32xf32>
    %178 = arith.addf %176, %177 : vector<2x32xf32>
    %179 = math.tanh %178 : vector<2x32xf32>
    %180 = arith.mulf %175, %179 : vector<2x32xf32>
    %181 = vector.extract_strided_slice %180 {offsets = [0, 0], sizes = [2, 16], strides = [1, 1]} : vector<2x32xf32> to vector<2x16xf32>
    %c8_41 = arith.constant 8 : index
    %c0_42 = arith.constant 0 : index
    %182 = vector.load %arg8[%c8_41, %c0_42] : memref<16x32xf32, #tpu.memory_space<vmem>>, vector<2x16xf32>
    tpu.vector_store %arg8[%c8_41, %c0_42], %181 {strides = array<i32>} : memref<16x32xf32, #tpu.memory_space<vmem>>, vector<2x16xf32>,
    %183 = vector.extract_strided_slice %180 {offsets = [0, 16], sizes = [2, 16], strides = [1, 1]} : vector<2x32xf32> to vector<2x16xf32>
    %c6_43 = arith.constant 6 : index
    %c16_44 = arith.constant 16 : index
    %184 = vector.load %arg8[%c6_43, %c16_44] : memref<16x32xf32, #tpu.memory_space<vmem>>, vector<2x16xf32>
    tpu.vector_store %arg8[%c6_43, %c16_44], %183 {strides = array<i32>} : memref<16x32xf32, #tpu.memory_space<vmem>>, vector<2x16xf32>,
    %cst_45 = arith.constant dense<0.000000e+00> : vector<2x128xf32>
    %185 = tpu.matmul %180, %5, %cst_45 {dimension_numbers = #tpu.dot_dimension_numbers<[1], [0], [0], [1], [0, 0, 1, 1], [], []>} : vector<2x32xf32>, vector<32x128xf32>, vector<2x128xf32> -> vector<2x128xf32>
    %186 = vector.extract_strided_slice %11 {offsets = [10, 0], sizes = [2, 128], strides = [1, 1]} : vector<16x128xf32> to vector<2x128xf32>
    %187 = vector.extract_strided_slice %12 {offsets = [4, 0], sizes = [2, 128], strides = [1, 1]} : vector<16x128xf32> to vector<2x128xf32>
    %188 = arith.addf %186, %187 : vector<2x128xf32>
    %189 = arith.addf %188, %185 : vector<2x128xf32>
    %190 = vector.extract_strided_slice %189 {offsets = [0, 0], sizes = [2, 32], strides = [1, 1]} : vector<2x128xf32> to vector<2x32xf32>
    %191 = arith.negf %190 : vector<2x32xf32>
    %192 = math.exp %191 : vector<2x32xf32>
    %cst_46 = arith.constant 1.000000e+00 : f32
    %193 = vector.broadcast %cst_46 : f32 to vector<2x32xf32>
    %194 = arith.addf %193, %192 : vector<2x32xf32>
    %195 = arith.divf %193, %194 : vector<2x32xf32>
    %196 = vector.extract_strided_slice %189 {offsets = [0, 32], sizes = [2, 32], strides = [1, 1]} : vector<2x128xf32> to vector<2x32xf32>
    %197 = arith.negf %196 : vector<2x32xf32>
    %198 = math.exp %197 : vector<2x32xf32>
    %cst_47 = arith.constant 1.000000e+00 : f32
    %199 = vector.broadcast %cst_47 : f32 to vector<2x32xf32>
    %200 = arith.addf %199, %198 : vector<2x32xf32>
    %201 = arith.divf %199, %200 : vector<2x32xf32>
    %202 = vector.extract_strided_slice %189 {offsets = [0, 64], sizes = [2, 32], strides = [1, 1]} : vector<2x128xf32> to vector<2x32xf32>
    %203 = math.tanh %202 : vector<2x32xf32>
    %204 = vector.extract_strided_slice %189 {offsets = [0, 96], sizes = [2, 32], strides = [1, 1]} : vector<2x128xf32> to vector<2x32xf32>
    %205 = arith.negf %204 : vector<2x32xf32>
    %206 = math.exp %205 : vector<2x32xf32>
    %cst_48 = arith.constant 1.000000e+00 : f32
    %207 = vector.broadcast %cst_48 : f32 to vector<2x32xf32>
    %208 = arith.addf %207, %206 : vector<2x32xf32>
    %209 = arith.divf %207, %208 : vector<2x32xf32>
    %210 = arith.mulf %201, %178 : vector<2x32xf32>
    %211 = arith.mulf %195, %203 : vector<2x32xf32>
    %212 = arith.addf %210, %211 : vector<2x32xf32>
    %213 = math.tanh %212 : vector<2x32xf32>
    %214 = arith.mulf %209, %213 : vector<2x32xf32>
    %215 = vector.extract_strided_slice %214 {offsets = [0, 0], sizes = [2, 16], strides = [1, 1]} : vector<2x32xf32> to vector<2x16xf32>
    %c10_49 = arith.constant 10 : index
    %c0_50 = arith.constant 0 : index
    %216 = vector.load %arg8[%c10_49, %c0_50] : memref<16x32xf32, #tpu.memory_space<vmem>>, vector<2x16xf32>
    tpu.vector_store %arg8[%c10_49, %c0_50], %215 {strides = array<i32>} : memref<16x32xf32, #tpu.memory_space<vmem>>, vector<2x16xf32>,
    %217 = vector.extract_strided_slice %214 {offsets = [0, 16], sizes = [2, 16], strides = [1, 1]} : vector<2x32xf32> to vector<2x16xf32>
    %c4_51 = arith.constant 4 : index
    %c16_52 = arith.constant 16 : index
    %218 = vector.load %arg8[%c4_51, %c16_52] : memref<16x32xf32, #tpu.memory_space<vmem>>, vector<2x16xf32>
    tpu.vector_store %arg8[%c4_51, %c16_52], %217 {strides = array<i32>} : memref<16x32xf32, #tpu.memory_space<vmem>>, vector<2x16xf32>,
    %cst_53 = arith.constant dense<0.000000e+00> : vector<2x128xf32>
    %219 = tpu.matmul %214, %5, %cst_53 {dimension_numbers = #tpu.dot_dimension_numbers<[1], [0], [0], [1], [0, 0, 1, 1], [], []>} : vector<2x32xf32>, vector<32x128xf32>, vector<2x128xf32> -> vector<2x128xf32>
    %220 = vector.extract_strided_slice %11 {offsets = [12, 0], sizes = [2, 128], strides = [1, 1]} : vector<16x128xf32> to vector<2x128xf32>
    %221 = vector.extract_strided_slice %12 {offsets = [2, 0], sizes = [2, 128], strides = [1, 1]} : vector<16x128xf32> to vector<2x128xf32>
    %222 = arith.addf %220, %221 : vector<2x128xf32>
    %223 = arith.addf %222, %219 : vector<2x128xf32>
    %224 = vector.extract_strided_slice %223 {offsets = [0, 0], sizes = [2, 32], strides = [1, 1]} : vector<2x128xf32> to vector<2x32xf32>
    %225 = arith.negf %224 : vector<2x32xf32>
    %226 = math.exp %225 : vector<2x32xf32>
    %cst_54 = arith.constant 1.000000e+00 : f32
    %227 = vector.broadcast %cst_54 : f32 to vector<2x32xf32>
    %228 = arith.addf %227, %226 : vector<2x32xf32>
    %229 = arith.divf %227, %228 : vector<2x32xf32>
    %230 = vector.extract_strided_slice %223 {offsets = [0, 32], sizes = [2, 32], strides = [1, 1]} : vector<2x128xf32> to vector<2x32xf32>
    %231 = arith.negf %230 : vector<2x32xf32>
    %232 = math.exp %231 : vector<2x32xf32>
    %cst_55 = arith.constant 1.000000e+00 : f32
    %233 = vector.broadcast %cst_55 : f32 to vector<2x32xf32>
    %234 = arith.addf %233, %232 : vector<2x32xf32>
    %235 = arith.divf %233, %234 : vector<2x32xf32>
    %236 = vector.extract_strided_slice %223 {offsets = [0, 64], sizes = [2, 32], strides = [1, 1]} : vector<2x128xf32> to vector<2x32xf32>
    %237 = math.tanh %236 : vector<2x32xf32>
    %238 = vector.extract_strided_slice %223 {offsets = [0, 96], sizes = [2, 32], strides = [1, 1]} : vector<2x128xf32> to vector<2x32xf32>
    %239 = arith.negf %238 : vector<2x32xf32>
    %240 = math.exp %239 : vector<2x32xf32>
    %cst_56 = arith.constant 1.000000e+00 : f32
    %241 = vector.broadcast %cst_56 : f32 to vector<2x32xf32>
    %242 = arith.addf %241, %240 : vector<2x32xf32>
    %243 = arith.divf %241, %242 : vector<2x32xf32>
    %244 = arith.mulf %235, %212 : vector<2x32xf32>
    %245 = arith.mulf %229, %237 : vector<2x32xf32>
    %246 = arith.addf %244, %245 : vector<2x32xf32>
    %247 = math.tanh %246 : vector<2x32xf32>
    %248 = arith.mulf %243, %247 : vector<2x32xf32>
    %249 = vector.extract_strided_slice %248 {offsets = [0, 0], sizes = [2, 16], strides = [1, 1]} : vector<2x32xf32> to vector<2x16xf32>
    %c12_57 = arith.constant 12 : index
    %c0_58 = arith.constant 0 : index
    %250 = vector.load %arg8[%c12_57, %c0_58] : memref<16x32xf32, #tpu.memory_space<vmem>>, vector<2x16xf32>
    tpu.vector_store %arg8[%c12_57, %c0_58], %249 {strides = array<i32>} : memref<16x32xf32, #tpu.memory_space<vmem>>, vector<2x16xf32>,
    %251 = vector.extract_strided_slice %248 {offsets = [0, 16], sizes = [2, 16], strides = [1, 1]} : vector<2x32xf32> to vector<2x16xf32>
    %c2_59 = arith.constant 2 : index
    %c16_60 = arith.constant 16 : index
    %252 = vector.load %arg8[%c2_59, %c16_60] : memref<16x32xf32, #tpu.memory_space<vmem>>, vector<2x16xf32>
    tpu.vector_store %arg8[%c2_59, %c16_60], %251 {strides = array<i32>} : memref<16x32xf32, #tpu.memory_space<vmem>>, vector<2x16xf32>,
    %cst_61 = arith.constant dense<0.000000e+00> : vector<2x128xf32>
    %253 = tpu.matmul %248, %5, %cst_61 {dimension_numbers = #tpu.dot_dimension_numbers<[1], [0], [0], [1], [0, 0, 1, 1], [], []>} : vector<2x32xf32>, vector<32x128xf32>, vector<2x128xf32> -> vector<2x128xf32>
    %254 = vector.extract_strided_slice %11 {offsets = [14, 0], sizes = [2, 128], strides = [1, 1]} : vector<16x128xf32> to vector<2x128xf32>
    %255 = vector.extract_strided_slice %12 {offsets = [0, 0], sizes = [2, 128], strides = [1, 1]} : vector<16x128xf32> to vector<2x128xf32>
    %256 = arith.addf %254, %255 : vector<2x128xf32>
    %257 = arith.addf %256, %253 : vector<2x128xf32>
    %258 = vector.extract_strided_slice %257 {offsets = [0, 0], sizes = [2, 32], strides = [1, 1]} : vector<2x128xf32> to vector<2x32xf32>
    %259 = arith.negf %258 : vector<2x32xf32>
    %260 = math.exp %259 : vector<2x32xf32>
    %cst_62 = arith.constant 1.000000e+00 : f32
    %261 = vector.broadcast %cst_62 : f32 to vector<2x32xf32>
    %262 = arith.addf %261, %260 : vector<2x32xf32>
    %263 = arith.divf %261, %262 : vector<2x32xf32>
    %264 = vector.extract_strided_slice %257 {offsets = [0, 32], sizes = [2, 32], strides = [1, 1]} : vector<2x128xf32> to vector<2x32xf32>
    %265 = arith.negf %264 : vector<2x32xf32>
    %266 = math.exp %265 : vector<2x32xf32>
    %cst_63 = arith.constant 1.000000e+00 : f32
    %267 = vector.broadcast %cst_63 : f32 to vector<2x32xf32>
    %268 = arith.addf %267, %266 : vector<2x32xf32>
    %269 = arith.divf %267, %268 : vector<2x32xf32>
    %270 = vector.extract_strided_slice %257 {offsets = [0, 64], sizes = [2, 32], strides = [1, 1]} : vector<2x128xf32> to vector<2x32xf32>
    %271 = math.tanh %270 : vector<2x32xf32>
    %272 = vector.extract_strided_slice %257 {offsets = [0, 96], sizes = [2, 32], strides = [1, 1]} : vector<2x128xf32> to vector<2x32xf32>
    %273 = arith.negf %272 : vector<2x32xf32>
    %274 = math.exp %273 : vector<2x32xf32>
    %cst_64 = arith.constant 1.000000e+00 : f32
    %275 = vector.broadcast %cst_64 : f32 to vector<2x32xf32>
    %276 = arith.addf %275, %274 : vector<2x32xf32>
    %277 = arith.divf %275, %276 : vector<2x32xf32>
    %278 = arith.mulf %269, %246 : vector<2x32xf32>
    %279 = arith.mulf %263, %271 : vector<2x32xf32>
    %280 = arith.addf %278, %279 : vector<2x32xf32>
    %281 = math.tanh %280 : vector<2x32xf32>
    %282 = arith.mulf %277, %281 : vector<2x32xf32>
    %283 = vector.extract_strided_slice %282 {offsets = [0, 0], sizes = [2, 16], strides = [1, 1]} : vector<2x32xf32> to vector<2x16xf32>
    %c14_65 = arith.constant 14 : index
    %c0_66 = arith.constant 0 : index
    %284 = vector.load %arg8[%c14_65, %c0_66] : memref<16x32xf32, #tpu.memory_space<vmem>>, vector<2x16xf32>
    tpu.vector_store %arg8[%c14_65, %c0_66], %283 {strides = array<i32>} : memref<16x32xf32, #tpu.memory_space<vmem>>, vector<2x16xf32>,
    %285 = vector.extract_strided_slice %282 {offsets = [0, 16], sizes = [2, 16], strides = [1, 1]} : vector<2x32xf32> to vector<2x16xf32>
    %c0_67 = arith.constant 0 : index
    %c16_68 = arith.constant 16 : index
    %286 = vector.load %arg8[%c0_67, %c16_68] : memref<16x32xf32, #tpu.memory_space<vmem>>, vector<2x16xf32>
    tpu.vector_store %arg8[%c0_67, %c16_68], %285 {strides = array<i32>} : memref<16x32xf32, #tpu.memory_space<vmem>>, vector<2x16xf32>,
    %c0_69 = arith.constant 0 : index
    %c0_70 = arith.constant 0 : index
    %287 = vector.load %arg8[%c0_69, %c0_70] : memref<16x32xf32, #tpu.memory_space<vmem>>, vector<16x32xf32>
    %c0_71 = arith.constant 0 : index
    %c0_72 = arith.constant 0 : index
    %c0_73 = arith.constant 0 : index
    %288 = vector.load %arg5[%c0_71, %c0_72, %c0_73] : memref<1x32x16xf32, #tpu.memory_space<vmem>>, vector<1x32x16xf32>
    %289 = vector.shape_cast %288 : vector<1x32x16xf32> to vector<32x16xf32>
    %cst_74 = arith.constant dense<0.000000e+00> : vector<16x16xf32>
    %290 = tpu.matmul %287, %289, %cst_74 {dimension_numbers = #tpu.dot_dimension_numbers<[1], [0], [0], [1], [0, 0, 1, 1], [], []>} : vector<16x32xf32>, vector<32x16xf32>, vector<16x16xf32> -> vector<16x16xf32>
    %c0_75 = arith.constant 0 : index
    %c0_76 = arith.constant 0 : index
    %c0_77 = arith.constant 0 : index
    %291 = vector.load %arg6[%c0_75, %c0_76, %c0_77] : memref<1x1x16xf32, #tpu.memory_space<vmem>>, vector<1x1x16xf32>
    %292 = vector.shape_cast %291 : vector<1x1x16xf32> to vector<1x16xf32>
    %293 = vector.broadcast %292 : vector<1x16xf32> to vector<16x16xf32>
    %294 = arith.addf %290, %293 : vector<16x16xf32>
    %c0_78 = arith.constant 0 : index
    %c0_79 = arith.constant 0 : index
    %c0_80 = arith.constant 0 : index
    %295 = vector.load %arg7[%c0_78, %c0_79, %c0_80] : memref<1x16x16xf32, #tpu.memory_space<vmem>>, vector<1x16x16xf32>
    %296 = vector.shape_cast %295 : vector<1x16x16xf32> to vector<16x16xf32>
    %297 = vector.shape_cast %294 : vector<16x16xf32> to vector<1x16x16xf32>
    tpu.vector_store %arg7[%c0_78, %c0_79, %c0_80], %297 {strides = array<i32>} : memref<1x16x16xf32, #tpu.memory_space<vmem>>, vector<1x16x16xf32>,
    return
  }
  func.func @transform_0(%arg0: i32) -> (i32, i32, i32) {
    %c0_i32 = arith.constant 0 : i32
    %c0_i32_0 = arith.constant 0 : i32
    %c0_i32_1 = arith.constant 0 : i32
    return %arg0, %c0_i32, %c0_i32_0 : i32, i32, i32
  }
  func.func @transform_1(%arg0: i32) -> (i32, i32, i32) {
    %c0_i32 = arith.constant 0 : i32
    %c0_i32_0 = arith.constant 0 : i32
    %c0_i32_1 = arith.constant 0 : i32
    return %arg0, %c0_i32, %c0_i32_0 : i32, i32, i32
  }
  func.func @transform_2(%arg0: i32) -> (i32, i32, i32) {
    %c0_i32 = arith.constant 0 : i32
    %c0_i32_0 = arith.constant 0 : i32
    %c0_i32_1 = arith.constant 0 : i32
    return %arg0, %c0_i32, %c0_i32_0 : i32, i32, i32
  }
  func.func @transform_3(%arg0: i32) -> (i32, i32, i32) {
    %c0_i32 = arith.constant 0 : i32
    %c0_i32_0 = arith.constant 0 : i32
    %c0_i32_1 = arith.constant 0 : i32
    return %arg0, %c0_i32, %c0_i32_0 : i32, i32, i32
  }
  func.func @transform_4(%arg0: i32) -> (i32, i32, i32) {
    %c0_i32 = arith.constant 0 : i32
    %c0_i32_0 = arith.constant 0 : i32
    %c0_i32_1 = arith.constant 0 : i32
    return %arg0, %c0_i32, %c0_i32_0 : i32, i32, i32
  }
  func.func @transform_5(%arg0: i32) -> (i32, i32, i32) {
    %c0_i32 = arith.constant 0 : i32
    %c0_i32_0 = arith.constant 0 : i32
    %c0_i32_1 = arith.constant 0 : i32
    return %arg0, %c0_i32, %c0_i32_0 : i32, i32, i32
  }
  func.func @transform_6(%arg0: i32) -> (i32, i32, i32) {
    %c0_i32 = arith.constant 0 : i32
    %c0_i32_0 = arith.constant 0 : i32
    %c0_i32_1 = arith.constant 0 : i32
    return %arg0, %c0_i32, %c0_i32_0 : i32, i32, i32
  }
}

module attributes {stable_mosaic.version = 11 : i64} {
  func.func @_attention_kernel(%arg0: memref<3x16x16xf32, #tpu.memory_space<vmem>>, %arg1: memref<16x16xf32, #tpu.memory_space<vmem>>) attributes {dimension_semantics = [], scalar_prefetch = 0 : i64, scratch_operands = 0 : i64, tpu.core_type = #tpu.core_type<tc>} {
    %c0 = arith.constant 0 : index
    %c0_0 = arith.constant 0 : index
    %c0_1 = arith.constant 0 : index
    %0 = vector.load %arg0[%c0, %c0_0, %c0_1] : memref<3x16x16xf32, #tpu.memory_space<vmem>>, vector<1x16x16xf32>
    %1 = vector.shape_cast %0 : vector<1x16x16xf32> to vector<16x16xf32>
    %c1 = arith.constant 1 : index
    %c0_2 = arith.constant 0 : index
    %c0_3 = arith.constant 0 : index
    %2 = vector.load %arg0[%c1, %c0_2, %c0_3] : memref<3x16x16xf32, #tpu.memory_space<vmem>>, vector<1x16x16xf32>
    %3 = vector.shape_cast %2 : vector<1x16x16xf32> to vector<16x16xf32>
    %c2 = arith.constant 2 : index
    %c0_4 = arith.constant 0 : index
    %c0_5 = arith.constant 0 : index
    %4 = vector.load %arg0[%c2, %c0_4, %c0_5] : memref<3x16x16xf32, #tpu.memory_space<vmem>>, vector<1x16x16xf32>
    %5 = vector.shape_cast %4 : vector<1x16x16xf32> to vector<16x16xf32>
    %6 = tpu.transpose %3, [1, 0] : vector<16x16xf32> -> vector<16x16xf32>
    %cst = arith.constant dense<0.000000e+00> : vector<16x16xf32>
    %7 = tpu.matmul %1, %6, %cst {dimension_numbers = #tpu.dot_dimension_numbers<[1], [0], [0], [1], [0, 0, 1, 1], [], []>} : vector<16x16xf32>, vector<16x16xf32>, vector<16x16xf32> -> vector<16x16xf32>
    %cst_6 = arith.constant 2.500000e-01 : f32
    %8 = vector.broadcast %cst_6 : f32 to vector<16x16xf32>
    %9 = arith.mulf %7, %8 : vector<16x16xf32>
    %10 = tpu.iota {dimensions = array<i32: 0>} : vector<16x16xi32>
    %c2_i32 = arith.constant 2 : i32
    %c0_i32 = arith.constant 0 : i32
    %11 = arith.cmpi eq, %c2_i32, %c0_i32 : i32
    %c1_i32 = arith.constant 1 : i32
    %12 = arith.select %11, %c1_i32, %c2_i32 : i32
    %13 = vector.broadcast %12 : i32 to vector<16x16xi32>
    %14 = arith.remsi %10, %13 : vector<16x16xi32>
    %c0_i32_7 = arith.constant 0 : i32
    %15 = vector.broadcast %c0_i32_7 : i32 to vector<16x16xi32>
    %16 = arith.cmpi ne, %14, %15 : vector<16x16xi32>
    %c0_i32_8 = arith.constant 0 : i32
    %17 = vector.broadcast %c0_i32_8 : i32 to vector<16x16xi32>
    %18 = arith.cmpi slt, %14, %17 : vector<16x16xi32>
    %c0_i32_9 = arith.constant 0 : i32
    %19 = arith.cmpi slt, %12, %c0_i32_9 : i32
    %20 = vector.broadcast %19 : i1 to vector<16x16xi1>
    %21 = vector.broadcast %20 : vector<16x16xi1> to vector<16x16xi1>
    %22 = arith.xori %18, %21 : vector<16x16xi1>
    %23 = arith.andi %22, %16 : vector<16x16xi1>
    %24 = vector.broadcast %12 : i32 to vector<16x16xi32>
    %25 = arith.addi %14, %24 : vector<16x16xi32>
    %26 = arith.select %23, %25, %14 : vector<16x16xi1>, vector<16x16xi32>
    %27 = tpu.iota {dimensions = array<i32: 1>} : vector<16x16xi32>
    %c2_i32_10 = arith.constant 2 : i32
    %c0_i32_11 = arith.constant 0 : i32
    %28 = arith.cmpi eq, %c2_i32_10, %c0_i32_11 : i32
    %c1_i32_12 = arith.constant 1 : i32
    %29 = arith.select %28, %c1_i32_12, %c2_i32_10 : i32
    %30 = vector.broadcast %29 : i32 to vector<16x16xi32>
    %31 = arith.remsi %27, %30 : vector<16x16xi32>
    %c0_i32_13 = arith.constant 0 : i32
    %32 = vector.broadcast %c0_i32_13 : i32 to vector<16x16xi32>
    %33 = arith.cmpi ne, %31, %32 : vector<16x16xi32>
    %c0_i32_14 = arith.constant 0 : i32
    %34 = vector.broadcast %c0_i32_14 : i32 to vector<16x16xi32>
    %35 = arith.cmpi slt, %31, %34 : vector<16x16xi32>
    %c0_i32_15 = arith.constant 0 : i32
    %36 = arith.cmpi slt, %29, %c0_i32_15 : i32
    %37 = vector.broadcast %36 : i1 to vector<16x16xi1>
    %38 = vector.broadcast %37 : vector<16x16xi1> to vector<16x16xi1>
    %39 = arith.xori %35, %38 : vector<16x16xi1>
    %40 = arith.andi %39, %33 : vector<16x16xi1>
    %41 = vector.broadcast %29 : i32 to vector<16x16xi32>
    %42 = arith.addi %31, %41 : vector<16x16xi32>
    %43 = arith.select %40, %42, %31 : vector<16x16xi1>, vector<16x16xi32>
    %44 = arith.cmpi eq, %26, %43 : vector<16x16xi32>
    %cst_16 = arith.constant -1.000000e+30 : f32
    %45 = vector.broadcast %cst_16 : f32 to vector<16x16xf32>
    %46 = arith.select %44, %9, %45 : vector<16x16xi1>, vector<16x16xf32>
    %cst_17 = arith.constant dense<0xFF800000> : vector<16xf32>
    %47 = vector.multi_reduction <maximumf>, %46, %cst_17 [1] : vector<16x16xf32> to vector<16xf32>
    %48 = vector.shape_cast %47 : vector<16xf32> to vector<16x1xf32>
    %49 = vector.broadcast %48 : vector<16x1xf32> to vector<16x16xf32>
    %50 = arith.subf %46, %49 : vector<16x16xf32>
    %51 = math.exp %50 : vector<16x16xf32>
    %cst_18 = arith.constant dense<0.000000e+00> : vector<16xf32>
    %52 = vector.multi_reduction <add>, %51, %cst_18 [1] : vector<16x16xf32> to vector<16xf32>
    %53 = vector.shape_cast %52 : vector<16xf32> to vector<16x1xf32>
    %54 = tpu.reciprocal %53 {approx = true} : vector<16x1xf32> -> vector<16x1xf32>
    %55 = vector.broadcast %54 : vector<16x1xf32> to vector<16x16xf32>
    %56 = arith.mulf %51, %55 : vector<16x16xf32>
    %cst_19 = arith.constant dense<0.000000e+00> : vector<16x16xf32>
    %57 = tpu.matmul %56, %5, %cst_19 {dimension_numbers = #tpu.dot_dimension_numbers<[1], [0], [0], [1], [0, 0, 1, 1], [], []>} : vector<16x16xf32>, vector<16x16xf32>, vector<16x16xf32> -> vector<16x16xf32>
    %c0_20 = arith.constant 0 : index
    %c0_21 = arith.constant 0 : index
    %58 = vector.load %arg1[%c0_20, %c0_21] : memref<16x16xf32, #tpu.memory_space<vmem>>, vector<16x16xf32>
    tpu.vector_store %arg1[%c0_20, %c0_21], %57 {strides = array<i32>} : memref<16x16xf32, #tpu.memory_space<vmem>>, vector<16x16xf32>,
    return
  }
}

</mosaic_0001>

<llo_original>
// kernel: f_att_forward.2
$region0: #{f_att_forward.2}
  #allocation0 [shape = 'u32[]', space=smem, size = 0x4, offset = 0x4, fixed_abs, tag = 'smem constant byte address 0x4 - core index']
  #allocation1 [shape = 'u32[144,128]{1,0:T(1,128)}', space=vmem, size = 0x12000, scoped, tag = 'internal scratch']
  #allocation2 [shape = 'f32[16,32]{1,0:T(8,128)}', space=vmem, size = 0x2000, scoped, tag = 'scratch operand']
  %s0 = inlined_call_operand.vmem [shape: f32[3,16,64], index: 0, kind: input, shape index: {}]
  %s1 = inlined_call_operand.hbm [shape: f32[3,64,256], index: 1, kind: input, shape index: {}]
  %s2 = inlined_call_operand.vmem [shape: f32[3,1,256], index: 2, kind: input, shape index: {}]
  %s3 = inlined_call_operand.vmem [shape: f32[3,32,128], index: 3, kind: input, shape index: {}]
  %s4 = inlined_call_operand.vmem [shape: f32[3,32,16], index: 4, kind: input, shape index: {}]
  %s5 = inlined_call_operand.vmem [shape: f32[3,1,16], index: 5, kind: input, shape index: {}]
  %s6 = inlined_call_operand.vmem [shape: f32[3,16,16], index: 6, kind: output, shape index: {}]
  %s7 = sld [smem:[#allocation0]]
  $region61: #{f_att_forward.2} parent=0
    _
  %s9 = ssub.s32 1, %s7
  %s10 = scalar_select 0, %s9, %s7
  $region1: #{f_att_forward.2} parent=0
    #allocation3 [shape = 'u8[131072]{0}', space=vmem, size = 0x20000, scoped, tag = 'input window, operand 1']
    #allocation4 [shape = 's32[2]{0}', space=sflag, size = 0x8, scoped, tag = 'scoped memory for f_att_forward.2']
    %11 = vsyncpa [#allocation4], 0
    %s12 = scalar_lea.sflag [#allocation4], 1
    %13 = vsyncpa %s12, 0
    loop: start=0, step=1, limit=5
    $region2: #{f_att_forward.2} parent=1 // loop_pre_header
      _
    $region3: #{f_att_forward.2} parent=1 // loop_header
      %s15 = sphi 0, %s19
      %p16 = scmp.ge.s32.totalorder %s15, 5
      %s25 = sphi 0, %s27
      %s28 = sphi 0, %s25
      %s29 = sphi 0, %s28
      %s45 = sphi 0, %s29
      %s51 = sphi 0, %s53
      %s54 = sphi 0, %s51
      %s55 = sphi 0, %s54
      %s71 = sphi 0, %s55
      %s77 = sphi 0, %s79
      %s80 = sphi 0, %s77
      %s81 = sphi 0, %s80
      %s97 = sphi 0, %s81
      %s103 = sphi 0, %s105
      %s106 = sphi 0, %s103
      %s107 = sphi 0, %s106
      %s123 = sphi 0, %s107
      %s129 = sphi 0, %s131
      %s132 = sphi 0, %s129
      %s133 = sphi 0, %s132
      %s149 = sphi 0, %s133
      %s155 = sphi 0, %s157
      %s158 = sphi 0, %s155
      %s159 = sphi 0, %s158
      %s175 = sphi 0, %s159
      %s181 = sphi 0, %s183
      %s184 = sphi 0, %s181
      %s185 = sphi 0, %s184
      %s201 = sphi 0, %s185
    $region4: #{f_att_forward.2} parent=1 // loop_header_branch
      %18 = sbr.rel (%p16) target = $region8
    $region5: #{f_att_forward.2} parent=1 // loop_body
      %s20 = ssub.s32 %s15, 1
      %s21 = ssub.s32 %s15, 2
      %s22 = sadd.s32 %s15, 1
      %s23 = ssub.s32 %s15, %s22
      %p24 = scmp.eq.s32.totalorder %s23, 0
      %s26 = sadd.s32 %s25, 1
      %s27 = scalar_select %p24, %s25, %s26
      %p30 = pneg %p24
      %p31 = scmp.eq.s32.totalorder %s15, 2
      %p32 = por %p30, %p31
      %p33 = scmp.ne.s32.totalorder %s25, %s28
      %p34 = scmp.eq.s32.totalorder %s15, 0
      %p35 = por %p33, %p34
      %p36 = scmp.ne.s32.totalorder %s25, %s28
      %p37 = scmp.eq.s32.totalorder %s20, 2
      %p38 = por %p36, %p37
      %p39 = scmp.ne.s32.totalorder %s28, %s29
      %p40 = scmp.eq.s32.totalorder %s20, 0
      %p41 = por %p39, %p40
      %p42 = scmp.ne.s32.totalorder %s28, %s29
      %p43 = scmp.eq.s32.totalorder %s21, 2
      %p44 = por %p42, %p43
      %p46 = scmp.ne.s32.totalorder %s29, %s45
      %p47 = scmp.eq.s32.totalorder %s21, 0
      %p48 = por %p46, %p47
      %s49 = ssub.s32 %s15, %s22
      %p50 = scmp.eq.s32.totalorder %s49, 0
      %s52 = sadd.s32 %s51, 1
      %s53 = scalar_select %p50, %s51, %s52
      %p56 = pneg %p50
      %p57 = scmp.eq.s32.totalorder %s15, 2
      %p58 = por %p56, %p57
      %p59 = scmp.ne.s32.totalorder %s51, %s54
      %p60 = scmp.eq.s32.totalorder %s15, 0
      %p61 = por %p59, %p60
      %p62 = scmp.ne.s32.totalorder %s51, %s54
      %p63 = scmp.eq.s32.totalorder %s20, 2
      %p64 = por %p62, %p63
      %p65 = scmp.ne.s32.totalorder %s54, %s55
      %p66 = scmp.eq.s32.totalorder %s20, 0
      %p67 = por %p65, %p66
      %p68 = scmp.ne.s32.totalorder %s54, %s55
      %p69 = scmp.eq.s32.totalorder %s21, 2
      %p70 = por %p68, %p69
      %p72 = scmp.ne.s32.totalorder %s55, %s71
      %p73 = scmp.eq.s32.totalorder %s21, 0
      %p74 = por %p72, %p73
      %s75 = ssub.s32 %s15, %s22
      %p76 = scmp.eq.s32.totalorder %s75, 0
      %s78 = sadd.s32 %s77, 1
      %s79 = scalar_select %p76, %s77, %s78
      %p82 = pneg %p76
      %p83 = scmp.eq.s32.totalorder %s15, 2
      %p84 = por %p82, %p83
      %p85 = scmp.ne.s32.totalorder %s77, %s80
      %p86 = scmp.eq.s32.totalorder %s15, 0
      %p87 = por %p85, %p86
      %p88 = scmp.ne.s32.totalorder %s77, %s80
      %p89 = scmp.eq.s32.totalorder %s20, 2
      %p90 = por %p88, %p89
      %p91 = scmp.ne.s32.totalorder %s80, %s81
      %p92 = scmp.eq.s32.totalorder %s20, 0
      %p93 = por %p91, %p92
      %p94 = scmp.ne.s32.totalorder %s80, %s81
      %p95 = scmp.eq.s32.totalorder %s21, 2
      %p96 = por %p94, %p95
      %p98 = scmp.ne.s32.totalorder %s81, %s97
      %p99 = scmp.eq.s32.totalorder %s21, 0
      %p100 = por %p98, %p99
      %s101 = ssub.s32 %s15, %s22
      %p102 = scmp.eq.s32.totalorder %s101, 0
      %s104 = sadd.s32 %s103, 1
      %s105 = scalar_select %p102, %s103, %s104
      %p108 = pneg %p102
      %p109 = scmp.eq.s32.totalorder %s15, 2
      %p110 = por %p108, %p109
      %p111 = scmp.ne.s32.totalorder %s103, %s106
      %p112 = scmp.eq.s32.totalorder %s15, 0
      %p113 = por %p111, %p112
      %p114 = scmp.ne.s32.totalorder %s103, %s106
      %p115 = scmp.eq.s32.totalorder %s20, 2
      %p116 = por %p114, %p115
      %p117 = scmp.ne.s32.totalorder %s106, %s107
      %p118 = scmp.eq.s32.totalorder %s20, 0
      %p119 = por %p117, %p118
      %p120 = scmp.ne.s32.totalorder %s106, %s107
      %p121 = scmp.eq.s32.totalorder %s21, 2
      %p122 = por %p120, %p121
      %p124 = scmp.ne.s32.totalorder %s107, %s123
      %p125 = scmp.eq.s32.totalorder %s21, 0
      %p126 = por %p124, %p125
      %s127 = ssub.s32 %s15, %s22
      %p128 = scmp.eq.s32.totalorder %s127, 0
      %s130 = sadd.s32 %s129, 1
      %s131 = scalar_select %p128, %s129, %s130
      %p134 = pneg %p128
      %p135 = scmp.eq.s32.totalorder %s15, 2
      %p136 = por %p134, %p135
      %p137 = scmp.ne.s32.totalorder %s129, %s132
      %p138 = scmp.eq.s32.totalorder %s15, 0
      %p139 = por %p137, %p138
      %p140 = scmp.ne.s32.totalorder %s129, %s132
      %p141 = scmp.eq.s32.totalorder %s20, 2
      %p142 = por %p140, %p141
      %p143 = scmp.ne.s32.totalorder %s132, %s133
      %p144 = scmp.eq.s32.totalorder %s20, 0
      %p145 = por %p143, %p144
      %p146 = scmp.ne.s32.totalorder %s132, %s133
      %p147 = scmp.eq.s32.totalorder %s21, 2
      %p148 = por %p146, %p147
      %p150 = scmp.ne.s32.totalorder %s133, %s149
      %p151 = scmp.eq.s32.totalorder %s21, 0
      %p152 = por %p150, %p151
      %s153 = ssub.s32 %s15, %s22
      %p154 = scmp.eq.s32.totalorder %s153, 0
      %s156 = sadd.s32 %s155, 1
      %s157 = scalar_select %p154, %s155, %s156
      %p160 = pneg %p154
      %p161 = scmp.eq.s32.totalorder %s15, 2
      %p162 = por %p160, %p161
      %p163 = scmp.ne.s32.totalorder %s155, %s158
      %p164 = scmp.eq.s32.totalorder %s15, 0
      %p165 = por %p163, %p164
      %p166 = scmp.ne.s32.totalorder %s155, %s158
      %p167 = scmp.eq.s32.totalorder %s20, 2
      %p168 = por %p166, %p167
      %p169 = scmp.ne.s32.totalorder %s158, %s159
      %p170 = scmp.eq.s32.totalorder %s20, 0
      %p171 = por %p169, %p170
      %p172 = scmp.ne.s32.totalorder %s158, %s159
      %p173 = scmp.eq.s32.totalorder %s21, 2
      %p174 = por %p172, %p173
      %p176 = scmp.ne.s32.totalorder %s159, %s175
      %p177 = scmp.eq.s32.totalorder %s21, 0
      %p178 = por %p176, %p177
      %s179 = ssub.s32 %s15, %s22
      %p180 = scmp.eq.s32.totalorder %s179, 0
      %s182 = sadd.s32 %s181, 1
      %s183 = scalar_select %p180, %s181, %s182
      %p186 = pneg %p180
      %p187 = scmp.eq.s32.totalorder %s15, 2
      %p188 = por %p186, %p187
      %p189 = scmp.ne.s32.totalorder %s181, %s184
      %p190 = scmp.eq.s32.totalorder %s15, 0
      %p191 = por %p189, %p190
      %p192 = scmp.ne.s32.totalorder %s181, %s184
      %p193 = scmp.eq.s32.totalorder %s20, 2
      %p194 = por %p192, %p193
      %p195 = scmp.ne.s32.totalorder %s184, %s185
      %p196 = scmp.eq.s32.totalorder %s20, 0
      %p197 = por %p195, %p196
      %p198 = scmp.ne.s32.totalorder %s184, %s185
      %p199 = scmp.eq.s32.totalorder %s21, 2
      %p200 = por %p198, %p199
      %p202 = scmp.ne.s32.totalorder %s185, %s201
      %p203 = scmp.eq.s32.totalorder %s21, 0
      %p204 = por %p202, %p203
      %p205 = scmp.le.s32.totalorder 1, %s15
      %p206 = scmp.lt.s32.totalorder %s15, 4
      %p207 = pnand %p205, %p206
      %p208 = pneg %p207
      // Predicated region
      $region9: #{f_att_forward.2} parent=5 // pred_check
        _
      $region10: #{f_att_forward.2} parent=5 // pred_check_branch
        %210 = sbr.rel (%p207) target = $region12
      $region11: #{f_att_forward.2} parent=5 // pred_region
        %s211 = ssub.s32 %s15, 1
      $region12: #{f_att_forward.2} parent=5 // pred_fallthru
        _
      %p212 = scmp.lt.s32.totalorder %s15, 3
      // Predicated region
      $region13: #{f_att_forward.2} parent=5 // pred_check
        %p213 = pneg %p212
      $region14: #{f_att_forward.2} parent=5 // pred_check_branch
        %215 = sbr.rel (%p213) target = $region16
      $region15: #{f_att_forward.2} parent=5 // pred_region
        // Predicated region
        $region17: #{f_att_forward.2} parent=15 // pred_check
          %p216 = pneg %p35
        $region18: #{f_att_forward.2} parent=15 // pred_check_branch
          %218 = sbr.rel (%p216) target = $region20
        $region19: #{f_att_forward.2} parent=15 // pred_region
          %p219 = scmp.lt.s32.totalorder %s15, 2
          %s220 = scalar_select %p219, %s15, 2
          %s221 = smul.addr %s220, 2
          %s222 = smul.addr %s221, 8
          %s223 = scalar_lea.vmem %s0, %s222
        $region20: #{f_att_forward.2} parent=15 // pred_fallthru
          _
        // Predicated region
        $region21: #{f_att_forward.2} parent=15 // pred_check
          %p224 = pneg %p61
        $region22: #{f_att_forward.2} parent=15 // pred_check_branch
          %226 = sbr.rel (%p224) target = $region24
        $region23: #{f_att_forward.2} parent=15 // pred_region
          %s227 = sand.u32 %s51, 1
          %s228 = scalar_lea.sflag [#allocation4], %s227
          %s229 = sand.u32 %s51, 1
          %s230 = smul.addr %s229, 128
          %s231 = scalar_lea.vmem [#allocation3], %s230
          %s233 = ssub.s32 2048, 2048
          %234 = vsyncadd %s228, %s233
          %s235 = smul.addr %s15, 16
          %s236 = smul.addr %s235, 128
          %s237 = scalar_lea.hbm %s1, %s236
          %s238 = sshll.u32 %s231, 4
          %s239 = int_to_ptr.vmem [resolvable:$true] %s238
          %244 = dma.hbm_to_vmem [thread:$0]  %s237, 2048, %s239, %s228, 256, 256, 16
        $region24: #{f_att_forward.2} parent=15 // pred_fallthru
          _
        // Predicated region
        $region25: #{f_att_forward.2} parent=15 // pred_check
          %p245 = pneg %p87
        $region26: #{f_att_forward.2} parent=15 // pred_check_branch
          %247 = sbr.rel (%p245) target = $region28
        $region27: #{f_att_forward.2} parent=15 // pred_region
          %p248 = scmp.lt.s32.totalorder %s15, 2
          %s249 = scalar_select %p248, %s15, 2
          %s250 = smul.addr %s249, 2
          %s251 = scalar_lea.vmem %s2, %s250
        $region28: #{f_att_forward.2} parent=15 // pred_fallthru
          _
        // Predicated region
        $region29: #{f_att_forward.2} parent=15 // pred_check
          %p252 = pneg %p113
        $region30: #{f_att_forward.2} parent=15 // pred_check_branch
          %254 = sbr.rel (%p252) target = $region32
        $region31: #{f_att_forward.2} parent=15 // pred_region
          %p255 = scmp.lt.s32.totalorder %s15, 2
          %s256 = scalar_select %p255, %s15, 2
          %s257 = smul.addr %s256, 4
          %s258 = smul.addr %s257, 8
          %s259 = scalar_lea.vmem %s3, %s258
        $region32: #{f_att_forward.2} parent=15 // pred_fallthru
          _
        // Predicated region
        $region33: #{f_att_forward.2} parent=15 // pred_check
          %p260 = pneg %p139
        $region34: #{f_att_forward.2} parent=15 // pred_check_branch
          %262 = sbr.rel (%p260) target = $region36
        $region35: #{f_att_forward.2} parent=15 // pred_region
          %p263 = scmp.lt.s32.totalorder %s15, 2
          %s264 = scalar_select %p263, %s15, 2
          %s265 = smul.addr %s264, 4
          %s266 = smul.addr %s265, 8
          %s267 = scalar_lea.vmem %s4, %s266
        $region36: #{f_att_forward.2} parent=15 // pred_fallthru
          _
        // Predicated region
        $region37: #{f_att_forward.2} parent=15 // pred_check
          %p268 = pneg %p165
        $region38: #{f_att_forward.2} parent=15 // pred_check_branch
          %270 = sbr.rel (%p268) target = $region40
        $region39: #{f_att_forward.2} parent=15 // pred_region
          %p271 = scmp.lt.s32.totalorder %s15, 2
          %s272 = scalar_select %p271, %s15, 2
          %s273 = scalar_lea.vmem %s5, %s272
        $region40: #{f_att_forward.2} parent=15 // pred_fallthru
          _
      $region16: #{f_att_forward.2} parent=5 // pred_fallthru
        _
      %p274 = scmp.le.s32.totalorder 1, %s15
      %p275 = scmp.lt.s32.totalorder %s15, 4
      %p276 = pnand %p274, %p275
      %p277 = pneg %p276
      // Predicated region
      $region41: #{f_att_forward.2} parent=5 // pred_check
        _
      $region42: #{f_att_forward.2} parent=5 // pred_check_branch
        %279 = sbr.rel (%p276) target = $region44
      $region43: #{f_att_forward.2} parent=5 // pred_region
        %s280 = ssub.s32 %s15, 1
        %s281 = sand.u32 %s54, 1
        %s282 = scalar_lea.sflag [#allocation4], %s281
        %s283 = sand.u32 %s54, 1
        %s284 = smul.addr %s283, 128
        %s285 = scalar_lea.vmem [#allocation3], %s284
        // Predicated region
        $region45: #{f_att_forward.2} parent=43 // pred_check
          %p286 = pneg %p67
        $region46: #{f_att_forward.2} parent=43 // pred_check_branch
          %288 = sbr.rel (%p286) target = $region48
        $region47: #{f_att_forward.2} parent=43 // pred_region
          %289 = dma.done %s282, 2048
        $region48: #{f_att_forward.2} parent=43 // pred_fallthru
          _
        %p290 = scmp.lt.s32.totalorder %s20, 2
        %s291 = scalar_select %p290, %s20, 2
        %s292 = smul.addr %s291, 2
        %s293 = smul.addr %s292, 8
        %s294 = scalar_lea.vmem %s0, %s293
        %p295 = pneg %p41
        %p296 = pneg %p38
        %s297 = sand.u32 %s54, 1
        %s298 = scalar_lea.sflag [#allocation4], %s297
        %s299 = sand.u32 %s54, 1
        %s300 = smul.addr %s299, 128
        %s301 = scalar_lea.vmem [#allocation3], %s300
        %p302 = pneg %p67
        %p303 = pneg %p64
        %p304 = scmp.lt.s32.totalorder %s20, 2
        %s305 = scalar_select %p304, %s20, 2
        %s306 = smul.addr %s305, 2
        %s307 = scalar_lea.vmem %s2, %s306
        %p308 = pneg %p93
        %p309 = pneg %p90
        %p310 = scmp.lt.s32.totalorder %s20, 2
        %s311 = scalar_select %p310, %s20, 2
        %s312 = smul.addr %s311, 4
        %s313 = smul.addr %s312, 8
        %s314 = scalar_lea.vmem %s3, %s313
        %p315 = pneg %p119
        %p316 = pneg %p116
        %p317 = scmp.lt.s32.totalorder %s20, 2
        %s318 = scalar_select %p317, %s20, 2
        %s319 = smul.addr %s318, 4
        %s320 = smul.addr %s319, 8
        %s321 = scalar_lea.vmem %s4, %s320
        %p322 = pneg %p145
        %p323 = pneg %p142
        %p324 = scmp.lt.s32.totalorder %s20, 2
        %s325 = scalar_select %p324, %s20, 2
        %s326 = scalar_lea.vmem %s5, %s325
        %p327 = pneg %p171
        %p328 = pneg %p168
        %p329 = pneg %p197
        %p330 = pneg %p194
        %p331 = scmp.lt.s32.totalorder %s20, 2
        %s332 = scalar_select %p331, %s20, 2
        %s333 = smul.addr %s332, 2
        %s334 = smul.addr %s333, 8
        %s335 = scalar_lea.vmem %s6, %s334
        %p336 = scmp.lt.s32.totalorder %s20, 2
        %s337 = scalar_select %p336, %s20, 2
        %s338 = smul.addr %s337, 2
        %s339 = smul.addr %s338, 8
        %s340 = scalar_lea.vmem %s0, %s339
        %p341 = scmp.lt.s32.totalorder %s20, 2
        %s342 = scalar_select %p341, %s20, 2
        %s343 = smul.addr %s342, 2
        %s344 = scalar_lea.vmem %s2, %s343
        %p345 = scmp.lt.s32.totalorder %s20, 2
        %s346 = scalar_select %p345, %s20, 2
        %s347 = smul.addr %s346, 4
        %s348 = smul.addr %s347, 8
        %s349 = scalar_lea.vmem %s3, %s348
        %p350 = scmp.lt.s32.totalorder %s20, 2
        %s351 = scalar_select %p350, %s20, 2
        %s352 = smul.addr %s351, 4
        %s353 = smul.addr %s352, 8
        %s354 = scalar_lea.vmem %s4, %s353
        %p355 = scmp.lt.s32.totalorder %s20, 2
        %s356 = scalar_select %p355, %s20, 2
        %s357 = scalar_lea.vmem %s5, %s356
        %p358 = scmp.lt.s32.totalorder %s20, 2
        %s359 = scalar_select %p358, %s20, 2
        %s360 = smul.addr %s359, 2
        %s361 = smul.addr %s360, 8
        %s362 = scalar_lea.vmem %s6, %s361
        %v363 = vld [vmem:[%s340] sm:$0xff]
        %v364 = vld [vmem:[%s340 + $0x8] sm:$0xff]
        %v365 = vld [vmem:[%s285] sm:$0xff]
        %v366 = vld [vmem:[%s285 + $0x8] sm:$0xff]
        %v367 = vld [vmem:[%s285 + $0x10] sm:$0xff]
        %v368 = vld [vmem:[%s285 + $0x18] sm:$0xff]
        %v369 = vld [vmem:[%s285 + $0x20] sm:$0xff]
        %v370 = vld [vmem:[%s285 + $0x28] sm:$0xff]
        %v371 = vld [vmem:[%s285 + $0x30] sm:$0xff]
        %v372 = vld [vmem:[%s285 + $0x38] sm:$0xff]
        %v373 = vld [vmem:[%s285 + $0x40] sm:$0xff]
        %v374 = vld [vmem:[%s285 + $0x48] sm:$0xff]
        %v375 = vld [vmem:[%s285 + $0x50] sm:$0xff]
        %v376 = vld [vmem:[%s285 + $0x58] sm:$0xff]
        %v377 = vld [vmem:[%s285 + $0x60] sm:$0xff]
        %v378 = vld [vmem:[%s285 + $0x68] sm:$0xff]
        %v379 = vld [vmem:[%s285 + $0x70] sm:$0xff]
        %v380 = vld [vmem:[%s285 + $0x78] sm:$0xff]
        %v381 = vld [vmem:[%s349] sm:$0xff]
        %v382 = vld [vmem:[%s349 + $0x8] sm:$0xff]
        %v383 = vld [vmem:[%s349 + $0x10] sm:$0xff]
        %v384 = vld [vmem:[%s349 + $0x18] sm:$0xff]
        %v385 = vld [vmem:[%s344] sm:$0x3]
        %v387 = vlaneseq
        %v388 = vshrl.u32 %v387, 7
        %v389 = vsub.s32 0, %v388
        %v390 = vrot.slane %v385, %v389
        %v391 = vlaneseq
        %v392 = vshrl.u32 %v391, 7
        %v393 = vsub.s32 1, %v392
        %v394 = vrot.slane %v385, %v393
        %vm397 = vcmask 523264
        %v399 = vsel %vm397, %v363, 0
        %v402 = vsel %vm397, %v364, 0
        %404 = vmatprep.subr.mxu0 %v366
        %405 = vmatpush1.msra.mxu0 %v365
        %406 = vmatprep.subr.mxu0 %v368
        %407 = vmatpush1.msra.mxu0 %v367
        %408 = vmatprep.subr.mxu0 %v370
        %409 = vmatpush1.msra.mxu0 %v369
        %410 = vmatprep.subr.mxu0 %v372
        %411 = vmatpush1.msra.mxu0 %v371
        %412 = vmatprep.subr.mxu0 %v374
        %413 = vmatpush1.msra.mxu0 %v373
        %414 = vmatprep.subr.mxu0 %v376
        %415 = vmatpush1.msra.mxu0 %v375
        %416 = vmatprep.subr.mxu0 %v378
        %417 = vmatpush1.msra.mxu0 %v377
        %418 = vmatprep.subr.mxu0 %v380
        %419 = vmatpush1.msra.mxu0 %v379
        %420 = vmatprep.subr.mxu0 0.0
        %421 = vmatpush1.msra.mxu0 0.0
        %422 = vmatprep.subr.mxu0 0.0
        %423 = vmatpush1.msra.mxu0 0.0
        %424 = vmatprep.subr.mxu0 0.0
        %425 = vmatpush1.msra.mxu0 0.0
        %426 = vmatprep.subr.mxu0 0.0
        %427 = vmatpush1.msra.mxu0 0.0
        %428 = vmatprep.subr.mxu0 0.0
        %429 = vmatpush1.msra.mxu0 0.0
        %430 = vmatprep.subr.mxu0 0.0
        %431 = vmatpush1.msra.mxu0 0.0
        %432 = vmatprep.subr.mxu0 0.0
        %433 = vmatpush1.msra.mxu0 0.0
        %434 = vmatprep.subr.mxu0 0.0
        %435 = vmatpush1.msra.mxu0 0.0
        %436 = vmatprep.subr.mxu0 0.0
        %437 = vmatpush1.msra.mxu0 0.0
        %438 = vmatprep.subr.mxu0 0.0
        %439 = vmatpush1.msra.mxu0 0.0
        %440 = vmatprep.subr.mxu0 0.0
        %441 = vmatpush1.msra.mxu0 0.0
        %442 = vmatprep.subr.mxu0 0.0
        %443 = vmatpush1.msra.mxu0 0.0
        %444 = vmatprep.subr.mxu0 0.0
        %445 = vmatpush1.msra.mxu0 0.0
        %446 = vmatprep.subr.mxu0 0.0
        %447 = vmatpush1.msra.mxu0 0.0
        %448 = vmatprep.subr.mxu0 0.0
        %449 = vmatpush1.msra.mxu0 0.0
        %450 = vmatprep.subr.mxu0 0.0
        %451 = vmatpush1.msra.mxu0 0.0
        %452 = vmatprep.subr.mxu0 0.0
        %453 = vmatpush1.msra.mxu0 0.0
        %454 = vmatprep.subr.mxu0 0.0
        %455 = vmatpush1.msra.mxu0 0.0
        %456 = vmatprep.subr.mxu0 0.0
        %457 = vmatpush1.msra.mxu0 0.0
        %458 = vmatprep.subr.mxu0 0.0
        %459 = vmatpush1.msra.mxu0 0.0
        %460 = vmatprep.subr.mxu0 0.0
        %461 = vmatpush1.msra.mxu0 0.0
        %462 = vmatprep.subr.mxu0 0.0
        %463 = vmatpush1.msra.mxu0 0.0
        %464 = vmatprep.subr.mxu0 0.0
        %465 = vmatpush1.msra.mxu0 0.0
        %466 = vmatprep.subr.mxu0 0.0
        %467 = vmatpush1.msra.mxu0 0.0
        %468 = vmatprep.mubr.f32.mxu0 0.0
        %469 = vmatmul.mubr.f32.gmra.mrb[0].mxu0 %v399
        %v470 = vpop.f32.mrb[0].mxu0
        %v471 = vadd.f32 %v390, %v470
        %v472 = vpop.f32.mrb[0].mxu0
        %v473 = vadd.f32 %v394, %v472
        %474 = vmatprep.mubr.f32.mxu0 0.0
        %475 = vmatmul.mubr.f32.gmra.mrb[0].mxu0 %v402
        %v476 = vpop.f32.mrb[0].mxu0
        %v477 = vadd.f32 %v390, %v476
        %v478 = vpop.f32.mrb[0].mxu0
        %v479 = vadd.f32 %v394, %v478
        %480 = vdwg.mxu0
        %vm481 = vcmask 261120
        %v483 = vsel %vm481, 0.0, 0
        %485 = vmatprep.subr.mxu0 0.0
        %486 = vmatpush1.msra.mxu0 %v381
        %487 = vmatprep.subr.mxu0 0.0
        %488 = vmatpush1.msra.mxu0 %v382
        %489 = vmatprep.subr.mxu0 0.0
        %490 = vmatpush1.msra.mxu0 %v383
        %491 = vmatprep.subr.mxu0 0.0
        %492 = vmatpush1.msra.mxu0 %v384
        %493 = vmatprep.subr.mxu0 0.0
        %494 = vmatpush1.msra.mxu0 0.0
        %495 = vmatprep.subr.mxu0 0.0
        %496 = vmatpush1.msra.mxu0 0.0
        %497 = vmatprep.subr.mxu0 0.0
        %498 = vmatpush1.msra.mxu0 0.0
        %499 = vmatprep.subr.mxu0 0.0
        %500 = vmatpush1.msra.mxu0 0.0
        %501 = vmatprep.subr.mxu0 0.0
        %502 = vmatpush1.msra.mxu0 0.0
        %503 = vmatprep.subr.mxu0 0.0
        %504 = vmatpush1.msra.mxu0 0.0
        %505 = vmatprep.subr.mxu0 0.0
        %506 = vmatpush1.msra.mxu0 0.0
        %507 = vmatprep.subr.mxu0 0.0
        %508 = vmatpush1.msra.mxu0 0.0
        %509 = vmatprep.subr.mxu0 0.0
        %510 = vmatpush1.msra.mxu0 0.0
        %511 = vmatprep.subr.mxu0 0.0
        %512 = vmatpush1.msra.mxu0 0.0
        %513 = vmatprep.subr.mxu0 0.0
        %514 = vmatpush1.msra.mxu0 0.0
        %515 = vmatprep.subr.mxu0 0.0
        %516 = vmatpush1.msra.mxu0 0.0
        %517 = vmatprep.subr.mxu0 0.0
        %518 = vmatpush1.msra.mxu0 0.0
        %519 = vmatprep.subr.mxu0 0.0
        %520 = vmatpush1.msra.mxu0 0.0
        %521 = vmatprep.subr.mxu0 0.0
        %522 = vmatpush1.msra.mxu0 0.0
        %523 = vmatprep.subr.mxu0 0.0
        %524 = vmatpush1.msra.mxu0 0.0
        %525 = vmatprep.subr.mxu0 0.0
        %526 = vmatpush1.msra.mxu0 0.0
        %527 = vmatprep.subr.mxu0 0.0
        %528 = vmatpush1.msra.mxu0 0.0
        %529 = vmatprep.subr.mxu0 0.0
        %530 = vmatpush1.msra.mxu0 0.0
        %531 = vmatprep.subr.mxu0 0.0
        %532 = vmatpush1.msra.mxu0 0.0
        %533 = vmatprep.subr.mxu0 0.0
        %534 = vmatpush1.msra.mxu0 0.0
        %535 = vmatprep.subr.mxu0 0.0
        %536 = vmatpush1.msra.mxu0 0.0
        %537 = vmatprep.subr.mxu0 0.0
        %538 = vmatpush1.msra.mxu0 0.0
        %539 = vmatprep.subr.mxu0 0.0
        %540 = vmatpush1.msra.mxu0 0.0
        %541 = vmatprep.subr.mxu0 0.0
        %542 = vmatpush1.msra.mxu0 0.0
        %543 = vmatprep.subr.mxu0 0.0
        %544 = vmatpush1.msra.mxu0 0.0
        %545 = vmatprep.subr.mxu0 0.0
        %546 = vmatpush1.msra.mxu0 0.0
        %547 = vmatprep.subr.mxu0 0.0
        %548 = vmatpush1.msra.mxu0 0.0
        %549 = vmatprep.mubr.f32.mxu0 0.0
        %550 = vmatmul.mubr.f32.gmra.mrb[0].mxu0 %v483
        %v551 = vpop.f32.mrb[0].mxu0
        %v552 = vadd.f32 0.0, %v551
        %v553 = vpop.f32.mrb[0].mxu0
        %554 = vdwg.mxu0
        %v556 = vrot.slane %v479, 6
        %v558 = vadd.f32 %v471, %v556
        %v559 = vadd.f32 %v558, %v552
        %v560 = vxor.u32 %v559, 2147483648
        %v561 = vmul.f32 %v560, 1.442695
        %v562 = vpow.pop %v561
        %v563 = vadd.f32 %v562, 1.0
        %v564 = vrcp.pop %v563
        %v565 = vmul.f32 1.0, %v564
        %v566 = vtanh.pop %v559
        %v567 = vmul.f32 %v565, 0.0
        %569 = vrot.lane.b32.xlu0 %v566, 64
        %v570 = vpop.permute.xlu0 %569
        %v572 = vmul.f32 %v565, %v570
        %574 = vrot.lane.b32.xlu0 %v572, 32
        %v575 = vpop.permute.xlu0 %574
        %v577 = vadd.f32 %v567, %v575
        %v578 = vtanh.pop %v577
        %580 = vrot.lane.b32.xlu0 %v578, 64
        %v581 = vpop.permute.xlu0 %580
        %v583 = vmul.f32 %v565, %v581
        %585 = vrot.lane.b32.xlu0 %v583, 32
        %v586 = vpop.permute.xlu0 %585
        %vm588 = vcmask 123904
        %589 = vst.msk [vmem:[#allocation2] sm:$0x3] %vm588, %v586
        %vm590 = vcmask 255104
        %591 = vst.msk [vmem:[#allocation2 + $0xe] sm:$0x3] %vm590, %v586
        %v592 = vsel %vm481, %v586, 0
        %594 = vmatprep.subr.mxu0 0.0
        %595 = vmatpush1.msra.mxu0 %v381
        %596 = vmatprep.subr.mxu0 0.0
        %597 = vmatpush1.msra.mxu0 %v382
        %598 = vmatprep.subr.mxu0 0.0
        %599 = vmatpush1.msra.mxu0 %v383
        %600 = vmatprep.subr.mxu0 0.0
        %601 = vmatpush1.msra.mxu0 %v384
        %602 = vmatprep.subr.mxu0 0.0
        %603 = vmatpush1.msra.mxu0 0.0
        %604 = vmatprep.subr.mxu0 0.0
        %605 = vmatpush1.msra.mxu0 0.0
        %606 = vmatprep.subr.mxu0 0.0
        %607 = vmatpush1.msra.mxu0 0.0
        %608 = vmatprep.subr.mxu0 0.0
        %609 = vmatpush1.msra.mxu0 0.0
        %610 = vmatprep.subr.mxu0 0.0
        %611 = vmatpush1.msra.mxu0 0.0
        %612 = vmatprep.subr.mxu0 0.0
        %613 = vmatpush1.msra.mxu0 0.0
        %614 = vmatprep.subr.mxu0 0.0
        %615 = vmatpush1.msra.mxu0 0.0
        %616 = vmatprep.subr.mxu0 0.0
        %617 = vmatpush1.msra.mxu0 0.0
        %618 = vmatprep.subr.mxu0 0.0
        %619 = vmatpush1.msra.mxu0 0.0
        %620 = vmatprep.subr.mxu0 0.0
        %621 = vmatpush1.msra.mxu0 0.0
        %622 = vmatprep.subr.mxu0 0.0
        %623 = vmatpush1.msra.mxu0 0.0
        %624 = vmatprep.subr.mxu0 0.0
        %625 = vmatpush1.msra.mxu0 0.0
        %626 = vmatprep.subr.mxu0 0.0
        %627 = vmatpush1.msra.mxu0 0.0
        %628 = vmatprep.subr.mxu0 0.0
        %629 = vmatpush1.msra.mxu0 0.0
        %630 = vmatprep.subr.mxu0 0.0
        %631 = vmatpush1.msra.mxu0 0.0
        %632 = vmatprep.subr.mxu0 0.0
        %633 = vmatpush1.msra.mxu0 0.0
        %634 = vmatprep.subr.mxu0 0.0
        %635 = vmatpush1.msra.mxu0 0.0
        %636 = vmatprep.subr.mxu0 0.0
        %637 = vmatpush1.msra.mxu0 0.0
        %638 = vmatprep.subr.mxu0 0.0
        %639 = vmatpush1.msra.mxu0 0.0
        %640 = vmatprep.subr.mxu0 0.0
        %641 = vmatpush1.msra.mxu0 0.0
        %642 = vmatprep.subr.mxu0 0.0
        %643 = vmatpush1.msra.mxu0 0.0
        %644 = vmatprep.subr.mxu0 0.0
        %645 = vmatpush1.msra.mxu0 0.0
        %646 = vmatprep.subr.mxu0 0.0
        %647 = vmatpush1.msra.mxu0 0.0
        %648 = vmatprep.subr.mxu0 0.0
        %649 = vmatpush1.msra.mxu0 0.0
        %650 = vmatprep.subr.mxu0 0.0
        %651 = vmatpush1.msra.mxu0 0.0
        %652 = vmatprep.subr.mxu0 0.0
        %653 = vmatpush1.msra.mxu0 0.0
        %654 = vmatprep.subr.mxu0 0.0
        %655 = vmatpush1.msra.mxu0 0.0
        %656 = vmatprep.subr.mxu0 0.0
        %657 = vmatpush1.msra.mxu0 0.0
        %658 = vmatprep.mubr.f32.mxu0 0.0
        %659 = vmatmul.mubr.f32.gmra.mrb[0].mxu0 %v592
        %v660 = vpop.f32.mrb[0].mxu0
        %v661 = vadd.f32 0.0, %v660
        %v662 = vpop.f32.mrb[0].mxu0
        %663 = vdwg.mxu0
        %v664 = vrot.slane %v479, 2
        %v666 = vadd.f32 %v471, %v664
        %v668 = vrot.slane %v661, 6
        %v670 = vadd.f32 %v666, %v668
        %v671 = vxor.u32 %v670, 2147483648
        %v672 = vmul.f32 %v671, 1.442695
        %v673 = vpow.pop %v672
        %v674 = vadd.f32 %v673, 1.0
        %v675 = vrcp.pop %v674
        %v676 = vmul.f32 1.0, %v675
        %v677 = vtanh.pop %v670
        %v679 = vrot.slane %v577, 6
        %v681 = vmul.f32 %v676, %v679
        %683 = vrot.lane.b32.xlu0 %v677, 64
        %v684 = vpop.permute.xlu0 %683
        %v686 = vmul.f32 %v676, %v684
        %688 = vrot.lane.b32.xlu0 %v686, 32
        %v689 = vpop.permute.xlu0 %688
        %v691 = vadd.f32 %v681, %v689
        %v692 = vtanh.pop %v691
        %694 = vrot.lane.b32.xlu0 %v692, 64
        %v695 = vpop.permute.xlu0 %694
        %v697 = vmul.f32 %v676, %v695
        %699 = vrot.lane.b32.xlu0 %v697, 32
        %v700 = vpop.permute.xlu0 %699
        %vm702 = vcmask 125954
        %703 = vst.msk [vmem:[#allocation2] sm:$0xc] %vm702, %v700
        %vm704 = vcmask 257154
        %705 = vst.msk [vmem:[#allocation2 + $0xa] sm:$0xc] %vm704, %v700
        %v706 = vrot.slane %v697, 2
        %707 = vrot.lane.b32.xlu0 %v706, 32
        %v708 = vpop.permute.xlu0 %707
        %v709 = vsel %vm481, %v708, 0
        %711 = vmatprep.subr.mxu0 0.0
        %712 = vmatpush1.msra.mxu0 %v381
        %713 = vmatprep.subr.mxu0 0.0
        %714 = vmatpush1.msra.mxu0 %v382
        %715 = vmatprep.subr.mxu0 0.0
        %716 = vmatpush1.msra.mxu0 %v383
        %717 = vmatprep.subr.mxu0 0.0
        %718 = vmatpush1.msra.mxu0 %v384
        %719 = vmatprep.subr.mxu0 0.0
        %720 = vmatpush1.msra.mxu0 0.0
        %721 = vmatprep.subr.mxu0 0.0
        %722 = vmatpush1.msra.mxu0 0.0
        %723 = vmatprep.subr.mxu0 0.0
        %724 = vmatpush1.msra.mxu0 0.0
        %725 = vmatprep.subr.mxu0 0.0
        %726 = vmatpush1.msra.mxu0 0.0
        %727 = vmatprep.subr.mxu0 0.0
        %728 = vmatpush1.msra.mxu0 0.0
        %729 = vmatprep.subr.mxu0 0.0
        %730 = vmatpush1.msra.mxu0 0.0
        %731 = vmatprep.subr.mxu0 0.0
        %732 = vmatpush1.msra.mxu0 0.0
        %733 = vmatprep.subr.mxu0 0.0
        %734 = vmatpush1.msra.mxu0 0.0
        %735 = vmatprep.subr.mxu0 0.0
        %736 = vmatpush1.msra.mxu0 0.0
        %737 = vmatprep.subr.mxu0 0.0
        %738 = vmatpush1.msra.mxu0 0.0
        %739 = vmatprep.subr.mxu0 0.0
        %740 = vmatpush1.msra.mxu0 0.0
        %741 = vmatprep.subr.mxu0 0.0
        %742 = vmatpush1.msra.mxu0 0.0
        %743 = vmatprep.subr.mxu0 0.0
        %744 = vmatpush1.msra.mxu0 0.0
        %745 = vmatprep.subr.mxu0 0.0
        %746 = vmatpush1.msra.mxu0 0.0
        %747 = vmatprep.subr.mxu0 0.0
        %748 = vmatpush1.msra.mxu0 0.0
        %749 = vmatprep.subr.mxu0 0.0
        %750 = vmatpush1.msra.mxu0 0.0
        %751 = vmatprep.subr.mxu0 0.0
        %752 = vmatpush1.msra.mxu0 0.0
        %753 = vmatprep.subr.mxu0 0.0
        %754 = vmatpush1.msra.mxu0 0.0
        %755 = vmatprep.subr.mxu0 0.0
        %756 = vmatpush1.msra.mxu0 0.0
        %757 = vmatprep.subr.mxu0 0.0
        %758 = vmatpush1.msra.mxu0 0.0
        %759 = vmatprep.subr.mxu0 0.0
        %760 = vmatpush1.msra.mxu0 0.0
        %761 = vmatprep.subr.mxu0 0.0
        %762 = vmatpush1.msra.mxu0 0.0
        %763 = vmatprep.subr.mxu0 0.0
        %764 = vmatpush1.msra.mxu0 0.0
        %765 = vmatprep.subr.mxu0 0.0
        %766 = vmatpush1.msra.mxu0 0.0
        %767 = vmatprep.subr.mxu0 0.0
        %768 = vmatpush1.msra.mxu0 0.0
        %769 = vmatprep.subr.mxu0 0.0
        %770 = vmatpush1.msra.mxu0 0.0
        %771 = vmatprep.subr.mxu0 0.0
        %772 = vmatpush1.msra.mxu0 0.0
        %773 = vmatprep.subr.mxu0 0.0
        %774 = vmatpush1.msra.mxu0 0.0
        %775 = vmatprep.mubr.f32.mxu0 0.0
        %776 = vmatmul.mubr.f32.gmra.mrb[0].mxu0 %v709
        %v777 = vpop.f32.mrb[0].mxu0
        %v778 = vadd.f32 0.0, %v777
        %v779 = vpop.f32.mrb[0].mxu0
        %780 = vdwg.mxu0
        %v782 = vrot.slane %v778, 4
        %v784 = vadd.f32 %v558, %v782
        %v785 = vxor.u32 %v784, 2147483648
        %v786 = vmul.f32 %v785, 1.442695
        %v787 = vpow.pop %v786
        %v788 = vadd.f32 %v787, 1.0
        %v789 = vrcp.pop %v788
        %v790 = vmul.f32 1.0, %v789
        %v791 = vtanh.pop %v784
        %v793 = vrot.slane %v691, 6
        %v795 = vmul.f32 %v790, %v793
        %797 = vrot.lane.b32.xlu0 %v791, 64
        %v798 = vpop.permute.xlu0 %797
        %v800 = vmul.f32 %v790, %v798
        %802 = vrot.lane.b32.xlu0 %v800, 32
        %v803 = vpop.permute.xlu0 %802
        %v805 = vadd.f32 %v795, %v803
        %v806 = vtanh.pop %v805
        %808 = vrot.lane.b32.xlu0 %v806, 64
        %v809 = vpop.permute.xlu0 %808
        %v811 = vmul.f32 %v790, %v809
        %813 = vrot.lane.b32.xlu0 %v811, 32
        %v814 = vpop.permute.xlu0 %813
        %vm816 = vcmask 128004
        %817 = vst.msk [vmem:[#allocation2] sm:$0x30] %vm816, %v814
        %vm818 = vcmask 259204
        %819 = vst.msk [vmem:[#allocation2 + $0x6] sm:$0x30] %vm818, %v814
        %v820 = vrot.slane %v811, 4
        %821 = vrot.lane.b32.xlu0 %v820, 32
        %v822 = vpop.permute.xlu0 %821
        %v823 = vsel %vm481, %v822, 0
        %825 = vmatprep.subr.mxu0 0.0
        %826 = vmatpush1.msra.mxu0 %v381
        %827 = vmatprep.subr.mxu0 0.0
        %828 = vmatpush1.msra.mxu0 %v382
        %829 = vmatprep.subr.mxu0 0.0
        %830 = vmatpush1.msra.mxu0 %v383
        %831 = vmatprep.subr.mxu0 0.0
        %832 = vmatpush1.msra.mxu0 %v384
        %833 = vmatprep.subr.mxu0 0.0
        %834 = vmatpush1.msra.mxu0 0.0
        %835 = vmatprep.subr.mxu0 0.0
        %836 = vmatpush1.msra.mxu0 0.0
        %837 = vmatprep.subr.mxu0 0.0
        %838 = vmatpush1.msra.mxu0 0.0
        %839 = vmatprep.subr.mxu0 0.0
        %840 = vmatpush1.msra.mxu0 0.0
        %841 = vmatprep.subr.mxu0 0.0
        %842 = vmatpush1.msra.mxu0 0.0
        %843 = vmatprep.subr.mxu0 0.0
        %844 = vmatpush1.msra.mxu0 0.0
        %845 = vmatprep.subr.mxu0 0.0
        %846 = vmatpush1.msra.mxu0 0.0
        %847 = vmatprep.subr.mxu0 0.0
        %848 = vmatpush1.msra.mxu0 0.0
        %849 = vmatprep.subr.mxu0 0.0
        %850 = vmatpush1.msra.mxu0 0.0
        %851 = vmatprep.subr.mxu0 0.0
        %852 = vmatpush1.msra.mxu0 0.0
        %853 = vmatprep.subr.mxu0 0.0
        %854 = vmatpush1.msra.mxu0 0.0
        %855 = vmatprep.subr.mxu0 0.0
        %856 = vmatpush1.msra.mxu0 0.0
        %857 = vmatprep.subr.mxu0 0.0
        %858 = vmatpush1.msra.mxu0 0.0
        %859 = vmatprep.subr.mxu0 0.0
        %860 = vmatpush1.msra.mxu0 0.0
        %861 = vmatprep.subr.mxu0 0.0
        %862 = vmatpush1.msra.mxu0 0.0
        %863 = vmatprep.subr.mxu0 0.0
        %864 = vmatpush1.msra.mxu0 0.0
        %865 = vmatprep.subr.mxu0 0.0
        %866 = vmatpush1.msra.mxu0 0.0
        %867 = vmatprep.subr.mxu0 0.0
        %868 = vmatpush1.msra.mxu0 0.0
        %869 = vmatprep.subr.mxu0 0.0
        %870 = vmatpush1.msra.mxu0 0.0
        %871 = vmatprep.subr.mxu0 0.0
        %872 = vmatpush1.msra.mxu0 0.0
        %873 = vmatprep.subr.mxu0 0.0
        %874 = vmatpush1.msra.mxu0 0.0
        %875 = vmatprep.subr.mxu0 0.0
        %876 = vmatpush1.msra.mxu0 0.0
        %877 = vmatprep.subr.mxu0 0.0
        %878 = vmatpush1.msra.mxu0 0.0
        %879 = vmatprep.subr.mxu0 0.0
        %880 = vmatpush1.msra.mxu0 0.0
        %881 = vmatprep.subr.mxu0 0.0
        %882 = vmatpush1.msra.mxu0 0.0
        %883 = vmatprep.subr.mxu0 0.0
        %884 = vmatpush1.msra.mxu0 0.0
        %885 = vmatprep.subr.mxu0 0.0
        %886 = vmatpush1.msra.mxu0 0.0
        %887 = vmatprep.subr.mxu0 0.0
        %888 = vmatpush1.msra.mxu0 0.0
        %889 = vmatprep.mubr.f32.mxu0 0.0
        %890 = vmatmul.mubr.f32.gmra.mrb[0].mxu0 %v823
        %v891 = vpop.f32.mrb[0].mxu0
        %v892 = vadd.f32 0.0, %v891
        %v893 = vpop.f32.mrb[0].mxu0
        %894 = vdwg.mxu0
        %v896 = vrot.slane %v892, 2
        %v898 = vadd.f32 %v666, %v896
        %v899 = vxor.u32 %v898, 2147483648
        %v900 = vmul.f32 %v899, 1.442695
        %v901 = vpow.pop %v900
        %v902 = vadd.f32 %v901, 1.0
        %v903 = vrcp.pop %v902
        %v904 = vmul.f32 1.0, %v903
        %v905 = vtanh.pop %v898
        %v907 = vrot.slane %v805, 6
        %v909 = vmul.f32 %v904, %v907
        %911 = vrot.lane.b32.xlu0 %v905, 64
        %v912 = vpop.permute.xlu0 %911
        %v914 = vmul.f32 %v904, %v912
        %916 = vrot.lane.b32.xlu0 %v914, 32
        %v917 = vpop.permute.xlu0 %916
        %v919 = vadd.f32 %v909, %v917
        %v920 = vtanh.pop %v919
        %922 = vrot.lane.b32.xlu0 %v920, 64
        %v923 = vpop.permute.xlu0 %922
        %v925 = vmul.f32 %v904, %v923
        %927 = vrot.lane.b32.xlu0 %v925, 32
        %v928 = vpop.permute.xlu0 %927
        %vm930 = vcmask 130054
        %931 = vst.msk [vmem:[#allocation2] sm:$0xc0] %vm930, %v928
        %vm932 = vcmask 261254
        %933 = vst.msk [vmem:[#allocation2 + $0x2] sm:$0xc0] %vm932, %v928
        %v934 = vrot.slane %v925, 6
        %935 = vrot.lane.b32.xlu0 %v934, 32
        %v936 = vpop.permute.xlu0 %935
        %v937 = vsel %vm481, %v936, 0
        %939 = vmatprep.subr.mxu0 0.0
        %940 = vmatpush1.msra.mxu0 %v381
        %941 = vmatprep.subr.mxu0 0.0
        %942 = vmatpush1.msra.mxu0 %v382
        %943 = vmatprep.subr.mxu0 0.0
        %944 = vmatpush1.msra.mxu0 %v383
        %945 = vmatprep.subr.mxu0 0.0
        %946 = vmatpush1.msra.mxu0 %v384
        %947 = vmatprep.subr.mxu0 0.0
        %948 = vmatpush1.msra.mxu0 0.0
        %949 = vmatprep.subr.mxu0 0.0
        %950 = vmatpush1.msra.mxu0 0.0
        %951 = vmatprep.subr.mxu0 0.0
        %952 = vmatpush1.msra.mxu0 0.0
        %953 = vmatprep.subr.mxu0 0.0
        %954 = vmatpush1.msra.mxu0 0.0
        %955 = vmatprep.subr.mxu0 0.0
        %956 = vmatpush1.msra.mxu0 0.0
        %957 = vmatprep.subr.mxu0 0.0
        %958 = vmatpush1.msra.mxu0 0.0
        %959 = vmatprep.subr.mxu0 0.0
        %960 = vmatpush1.msra.mxu0 0.0
        %961 = vmatprep.subr.mxu0 0.0
        %962 = vmatpush1.msra.mxu0 0.0
        %963 = vmatprep.subr.mxu0 0.0
        %964 = vmatpush1.msra.mxu0 0.0
        %965 = vmatprep.subr.mxu0 0.0
        %966 = vmatpush1.msra.mxu0 0.0
        %967 = vmatprep.subr.mxu0 0.0
        %968 = vmatpush1.msra.mxu0 0.0
        %969 = vmatprep.subr.mxu0 0.0
        %970 = vmatpush1.msra.mxu0 0.0
        %971 = vmatprep.subr.mxu0 0.0
        %972 = vmatpush1.msra.mxu0 0.0
        %973 = vmatprep.subr.mxu0 0.0
        %974 = vmatpush1.msra.mxu0 0.0
        %975 = vmatprep.subr.mxu0 0.0
        %976 = vmatpush1.msra.mxu0 0.0
        %977 = vmatprep.subr.mxu0 0.0
        %978 = vmatpush1.msra.mxu0 0.0
        %979 = vmatprep.subr.mxu0 0.0
        %980 = vmatpush1.msra.mxu0 0.0
        %981 = vmatprep.subr.mxu0 0.0
        %982 = vmatpush1.msra.mxu0 0.0
        %983 = vmatprep.subr.mxu0 0.0
        %984 = vmatpush1.msra.mxu0 0.0
        %985 = vmatprep.subr.mxu0 0.0
        %986 = vmatpush1.msra.mxu0 0.0
        %987 = vmatprep.subr.mxu0 0.0
        %988 = vmatpush1.msra.mxu0 0.0
        %989 = vmatprep.subr.mxu0 0.0
        %990 = vmatpush1.msra.mxu0 0.0
        %991 = vmatprep.subr.mxu0 0.0
        %992 = vmatpush1.msra.mxu0 0.0
        %993 = vmatprep.subr.mxu0 0.0
        %994 = vmatpush1.msra.mxu0 0.0
        %995 = vmatprep.subr.mxu0 0.0
        %996 = vmatpush1.msra.mxu0 0.0
        %997 = vmatprep.subr.mxu0 0.0
        %998 = vmatpush1.msra.mxu0 0.0
        %999 = vmatprep.subr.mxu0 0.0
        %1000 = vmatpush1.msra.mxu0 0.0
        %1001 = vmatprep.subr.mxu0 0.0
        %1002 = vmatpush1.msra.mxu0 0.0
        %1003 = vmatprep.mubr.f32.mxu0 0.0
        %1004 = vmatmul.mubr.f32.gmra.mrb[0].mxu0 %v937
        %v1005 = vpop.f32.mrb[0].mxu0
        %v1006 = vadd.f32 0.0, %v1005
        %v1007 = vpop.f32.mrb[0].mxu0
        %1008 = vdwg.mxu0
        %v1010 = vrot.slane %v473, 6
        %v1012 = vadd.f32 %v477, %v1010
        %v1013 = vadd.f32 %v1012, %v1006
        %v1014 = vxor.u32 %v1013, 2147483648
        %v1015 = vmul.f32 %v1014, 1.442695
        %v1016 = vpow.pop %v1015
        %v1017 = vadd.f32 %v1016, 1.0
        %v1018 = vrcp.pop %v1017
        %v1019 = vmul.f32 1.0, %v1018
        %v1020 = vtanh.pop %v1013
        %v1022 = vrot.slane %v919, 6
        %v1024 = vmul.f32 %v1019, %v1022
        %1026 = vrot.lane.b32.xlu0 %v1020, 64
        %v1027 = vpop.permute.xlu0 %1026
        %v1029 = vmul.f32 %v1019, %v1027
        %1031 = vrot.lane.b32.xlu0 %v1029, 32
        %v1032 = vpop.permute.xlu0 %1031
        %v1034 = vadd.f32 %v1024, %v1032
        %v1035 = vtanh.pop %v1034
        %1037 = vrot.lane.b32.xlu0 %v1035, 64
        %v1038 = vpop.permute.xlu0 %1037
        %v1040 = vmul.f32 %v1019, %v1038
        %1042 = vrot.lane.b32.xlu0 %v1040, 32
        %v1043 = vpop.permute.xlu0 %1042
        %1045 = vst.msk [vmem:[#allocation2 + $0x8] sm:$0x3] %vm588, %v1043
        %1046 = vst.msk [vmem:[#allocation2 + $0x6] sm:$0x3] %vm590, %v1043
        %v1047 = vsel %vm481, %v1043, 0
        %1049 = vmatprep.subr.mxu0 0.0
        %1050 = vmatpush1.msra.mxu0 %v381
        %1051 = vmatprep.subr.mxu0 0.0
        %1052 = vmatpush1.msra.mxu0 %v382
        %1053 = vmatprep.subr.mxu0 0.0
        %1054 = vmatpush1.msra.mxu0 %v383
        %1055 = vmatprep.subr.mxu0 0.0
        %1056 = vmatpush1.msra.mxu0 %v384
        %1057 = vmatprep.subr.mxu0 0.0
        %1058 = vmatpush1.msra.mxu0 0.0
        %1059 = vmatprep.subr.mxu0 0.0
        %1060 = vmatpush1.msra.mxu0 0.0
        %1061 = vmatprep.subr.mxu0 0.0
        %1062 = vmatpush1.msra.mxu0 0.0
        %1063 = vmatprep.subr.mxu0 0.0
        %1064 = vmatpush1.msra.mxu0 0.0
        %1065 = vmatprep.subr.mxu0 0.0
        %1066 = vmatpush1.msra.mxu0 0.0
        %1067 = vmatprep.subr.mxu0 0.0
        %1068 = vmatpush1.msra.mxu0 0.0
        %1069 = vmatprep.subr.mxu0 0.0
        %1070 = vmatpush1.msra.mxu0 0.0
        %1071 = vmatprep.subr.mxu0 0.0
        %1072 = vmatpush1.msra.mxu0 0.0
        %1073 = vmatprep.subr.mxu0 0.0
        %1074 = vmatpush1.msra.mxu0 0.0
        %1075 = vmatprep.subr.mxu0 0.0
        %1076 = vmatpush1.msra.mxu0 0.0
        %1077 = vmatprep.subr.mxu0 0.0
        %1078 = vmatpush1.msra.mxu0 0.0
        %1079 = vmatprep.subr.mxu0 0.0
        %1080 = vmatpush1.msra.mxu0 0.0
        %1081 = vmatprep.subr.mxu0 0.0
        %1082 = vmatpush1.msra.mxu0 0.0
        %1083 = vmatprep.subr.mxu0 0.0
        %1084 = vmatpush1.msra.mxu0 0.0
        %1085 = vmatprep.subr.mxu0 0.0
        %1086 = vmatpush1.msra.mxu0 0.0
        %1087 = vmatprep.subr.mxu0 0.0
        %1088 = vmatpush1.msra.mxu0 0.0
        %1089 = vmatprep.subr.mxu0 0.0
        %1090 = vmatpush1.msra.mxu0 0.0
        %1091 = vmatprep.subr.mxu0 0.0
        %1092 = vmatpush1.msra.mxu0 0.0
        %1093 = vmatprep.subr.mxu0 0.0
        %1094 = vmatpush1.msra.mxu0 0.0
        %1095 = vmatprep.subr.mxu0 0.0
        %1096 = vmatpush1.msra.mxu0 0.0
        %1097 = vmatprep.subr.mxu0 0.0
        %1098 = vmatpush1.msra.mxu0 0.0
        %1099 = vmatprep.subr.mxu0 0.0
        %1100 = vmatpush1.msra.mxu0 0.0
        %1101 = vmatprep.subr.mxu0 0.0
        %1102 = vmatpush1.msra.mxu0 0.0
        %1103 = vmatprep.subr.mxu0 0.0
        %1104 = vmatpush1.msra.mxu0 0.0
        %1105 = vmatprep.subr.mxu0 0.0
        %1106 = vmatpush1.msra.mxu0 0.0
        %1107 = vmatprep.subr.mxu0 0.0
        %1108 = vmatpush1.msra.mxu0 0.0
        %1109 = vmatprep.subr.mxu0 0.0
        %1110 = vmatpush1.msra.mxu0 0.0
        %1111 = vmatprep.subr.mxu0 0.0
        %1112 = vmatpush1.msra.mxu0 0.0
        %1113 = vmatprep.mubr.f32.mxu0 0.0
        %1114 = vmatmul.mubr.f32.gmra.mrb[0].mxu0 %v1047
        %v1115 = vpop.f32.mrb[0].mxu0
        %v1116 = vadd.f32 0.0, %v1115
        %v1117 = vpop.f32.mrb[0].mxu0
        %1118 = vdwg.mxu0
        %v1119 = vrot.slane %v473, 2
        %v1121 = vadd.f32 %v477, %v1119
        %v1123 = vrot.slane %v1116, 6
        %v1125 = vadd.f32 %v1121, %v1123
        %v1126 = vxor.u32 %v1125, 2147483648
        %v1127 = vmul.f32 %v1126, 1.442695
        %v1128 = vpow.pop %v1127
        %v1129 = vadd.f32 %v1128, 1.0
        %v1130 = vrcp.pop %v1129
        %v1131 = vmul.f32 1.0, %v1130
        %v1132 = vtanh.pop %v1125
        %v1134 = vrot.slane %v1034, 6
        %v1136 = vmul.f32 %v1131, %v1134
        %1138 = vrot.lane.b32.xlu0 %v1132, 64
        %v1139 = vpop.permute.xlu0 %1138
        %v1141 = vmul.f32 %v1131, %v1139
        %1143 = vrot.lane.b32.xlu0 %v1141, 32
        %v1144 = vpop.permute.xlu0 %1143
        %v1146 = vadd.f32 %v1136, %v1144
        %v1147 = vtanh.pop %v1146
        %1149 = vrot.lane.b32.xlu0 %v1147, 64
        %v1150 = vpop.permute.xlu0 %1149
        %v1152 = vmul.f32 %v1131, %v1150
        %1154 = vrot.lane.b32.xlu0 %v1152, 32
        %v1155 = vpop.permute.xlu0 %1154
        %1157 = vst.msk [vmem:[#allocation2 + $0x8] sm:$0xc] %vm702, %v1155
        %1158 = vst.msk [vmem:[#allocation2 + $0x2] sm:$0xc] %vm704, %v1155
        %v1159 = vrot.slane %v1152, 2
        %1160 = vrot.lane.b32.xlu0 %v1159, 32
        %v1161 = vpop.permute.xlu0 %1160
        %v1162 = vsel %vm481, %v1161, 0
        %1164 = vmatprep.subr.mxu0 0.0
        %1165 = vmatpush1.msra.mxu0 %v381
        %1166 = vmatprep.subr.mxu0 0.0
        %1167 = vmatpush1.msra.mxu0 %v382
        %1168 = vmatprep.subr.mxu0 0.0
        %1169 = vmatpush1.msra.mxu0 %v383
        %1170 = vmatprep.subr.mxu0 0.0
        %1171 = vmatpush1.msra.mxu0 %v384
        %1172 = vmatprep.subr.mxu0 0.0
        %1173 = vmatpush1.msra.mxu0 0.0
        %1174 = vmatprep.subr.mxu0 0.0
        %1175 = vmatpush1.msra.mxu0 0.0
        %1176 = vmatprep.subr.mxu0 0.0
        %1177 = vmatpush1.msra.mxu0 0.0
        %1178 = vmatprep.subr.mxu0 0.0
        %1179 = vmatpush1.msra.mxu0 0.0
        %1180 = vmatprep.subr.mxu0 0.0
        %1181 = vmatpush1.msra.mxu0 0.0
        %1182 = vmatprep.subr.mxu0 0.0
        %1183 = vmatpush1.msra.mxu0 0.0
        %1184 = vmatprep.subr.mxu0 0.0
        %1185 = vmatpush1.msra.mxu0 0.0
        %1186 = vmatprep.subr.mxu0 0.0
        %1187 = vmatpush1.msra.mxu0 0.0
        %1188 = vmatprep.subr.mxu0 0.0
        %1189 = vmatpush1.msra.mxu0 0.0
        %1190 = vmatprep.subr.mxu0 0.0
        %1191 = vmatpush1.msra.mxu0 0.0
        %1192 = vmatprep.subr.mxu0 0.0
        %1193 = vmatpush1.msra.mxu0 0.0
        %1194 = vmatprep.subr.mxu0 0.0
        %1195 = vmatpush1.msra.mxu0 0.0
        %1196 = vmatprep.subr.mxu0 0.0
        %1197 = vmatpush1.msra.mxu0 0.0
        %1198 = vmatprep.subr.mxu0 0.0
        %1199 = vmatpush1.msra.mxu0 0.0
        %1200 = vmatprep.subr.mxu0 0.0
        %1201 = vmatpush1.msra.mxu0 0.0
        %1202 = vmatprep.subr.mxu0 0.0
        %1203 = vmatpush1.msra.mxu0 0.0
        %1204 = vmatprep.subr.mxu0 0.0
        %1205 = vmatpush1.msra.mxu0 0.0
        %1206 = vmatprep.subr.mxu0 0.0
        %1207 = vmatpush1.msra.mxu0 0.0
        %1208 = vmatprep.subr.mxu0 0.0
        %1209 = vmatpush1.msra.mxu0 0.0
        %1210 = vmatprep.subr.mxu0 0.0
        %1211 = vmatpush1.msra.mxu0 0.0
        %1212 = vmatprep.subr.mxu0 0.0
        %1213 = vmatpush1.msra.mxu0 0.0
        %1214 = vmatprep.subr.mxu0 0.0
        %1215 = vmatpush1.msra.mxu0 0.0
        %1216 = vmatprep.subr.mxu0 0.0
        %1217 = vmatpush1.msra.mxu0 0.0
        %1218 = vmatprep.subr.mxu0 0.0
        %1219 = vmatpush1.msra.mxu0 0.0
        %1220 = vmatprep.subr.mxu0 0.0
        %1221 = vmatpush1.msra.mxu0 0.0
        %1222 = vmatprep.subr.mxu0 0.0
        %1223 = vmatpush1.msra.mxu0 0.0
        %1224 = vmatprep.subr.mxu0 0.0
        %1225 = vmatpush1.msra.mxu0 0.0
        %1226 = vmatprep.subr.mxu0 0.0
        %1227 = vmatpush1.msra.mxu0 0.0
        %1228 = vmatprep.mubr.f32.mxu0 0.0
        %1229 = vmatmul.mubr.f32.gmra.mrb[0].mxu0 %v1162
        %v1230 = vpop.f32.mrb[0].mxu0
        %v1231 = vadd.f32 0.0, %v1230
        %v1232 = vpop.f32.mrb[0].mxu0
        %1233 = vdwg.mxu0
        %v1235 = vrot.slane %v1231, 4
        %v1237 = vadd.f32 %v1012, %v1235
        %v1238 = vxor.u32 %v1237, 2147483648
        %v1239 = vmul.f32 %v1238, 1.442695
        %v1240 = vpow.pop %v1239
        %v1241 = vadd.f32 %v1240, 1.0
        %v1242 = vrcp.pop %v1241
        %v1243 = vmul.f32 1.0, %v1242
        %v1244 = vtanh.pop %v1237
        %v1246 = vrot.slane %v1146, 6
        %v1248 = vmul.f32 %v1243, %v1246
        %1250 = vrot.lane.b32.xlu0 %v1244, 64
        %v1251 = vpop.permute.xlu0 %1250
        %v1253 = vmul.f32 %v1243, %v1251
        %1255 = vrot.lane.b32.xlu0 %v1253, 32
        %v1256 = vpop.permute.xlu0 %1255
        %v1258 = vadd.f32 %v1248, %v1256
        %v1259 = vtanh.pop %v1258
        %1261 = vrot.lane.b32.xlu0 %v1259, 64
        %v1262 = vpop.permute.xlu0 %1261
        %v1264 = vmul.f32 %v1243, %v1262
        %1266 = vrot.lane.b32.xlu0 %v1264, 32
        %v1267 = vpop.permute.xlu0 %1266
        %1269 = vst.msk [vmem:[#allocation2 + $0x8] sm:$0x30] %vm816, %v1267
        %1270 = vst.msk [vmem:[#allocation2 - $0x2] sm:$0x30] %vm818, %v1267
        %v1271 = vrot.slane %v1264, 4
        %1272 = vrot.lane.b32.xlu0 %v1271, 32
        %v1273 = vpop.permute.xlu0 %1272
        %v1274 = vsel %vm481, %v1273, 0
        %1276 = vmatprep.subr.mxu0 0.0
        %1277 = vmatpush1.msra.mxu0 %v381
        %1278 = vmatprep.subr.mxu0 0.0
        %1279 = vmatpush1.msra.mxu0 %v382
        %1280 = vmatprep.subr.mxu0 0.0
        %1281 = vmatpush1.msra.mxu0 %v383
        %1282 = vmatprep.subr.mxu0 0.0
        %1283 = vmatpush1.msra.mxu0 %v384
        %1284 = vmatprep.subr.mxu0 0.0
        %1285 = vmatpush1.msra.mxu0 0.0
        %1286 = vmatprep.subr.mxu0 0.0
        %1287 = vmatpush1.msra.mxu0 0.0
        %1288 = vmatprep.subr.mxu0 0.0
        %1289 = vmatpush1.msra.mxu0 0.0
        %1290 = vmatprep.subr.mxu0 0.0
        %1291 = vmatpush1.msra.mxu0 0.0
        %1292 = vmatprep.subr.mxu0 0.0
        %1293 = vmatpush1.msra.mxu0 0.0
        %1294 = vmatprep.subr.mxu0 0.0
        %1295 = vmatpush1.msra.mxu0 0.0
        %1296 = vmatprep.subr.mxu0 0.0
        %1297 = vmatpush1.msra.mxu0 0.0
        %1298 = vmatprep.subr.mxu0 0.0
        %1299 = vmatpush1.msra.mxu0 0.0
        %1300 = vmatprep.subr.mxu0 0.0
        %1301 = vmatpush1.msra.mxu0 0.0
        %1302 = vmatprep.subr.mxu0 0.0
        %1303 = vmatpush1.msra.mxu0 0.0
        %1304 = vmatprep.subr.mxu0 0.0
        %1305 = vmatpush1.msra.mxu0 0.0
        %1306 = vmatprep.subr.mxu0 0.0
        %1307 = vmatpush1.msra.mxu0 0.0
        %1308 = vmatprep.subr.mxu0 0.0
        %1309 = vmatpush1.msra.mxu0 0.0
        %1310 = vmatprep.subr.mxu0 0.0
        %1311 = vmatpush1.msra.mxu0 0.0
        %1312 = vmatprep.subr.mxu0 0.0
        %1313 = vmatpush1.msra.mxu0 0.0
        %1314 = vmatprep.subr.mxu0 0.0
        %1315 = vmatpush1.msra.mxu0 0.0
        %1316 = vmatprep.subr.mxu0 0.0
        %1317 = vmatpush1.msra.mxu0 0.0
        %1318 = vmatprep.subr.mxu0 0.0
        %1319 = vmatpush1.msra.mxu0 0.0
        %1320 = vmatprep.subr.mxu0 0.0
        %1321 = vmatpush1.msra.mxu0 0.0
        %1322 = vmatprep.subr.mxu0 0.0
        %1323 = vmatpush1.msra.mxu0 0.0
        %1324 = vmatprep.subr.mxu0 0.0
        %1325 = vmatpush1.msra.mxu0 0.0
        %1326 = vmatprep.subr.mxu0 0.0
        %1327 = vmatpush1.msra.mxu0 0.0
        %1328 = vmatprep.subr.mxu0 0.0
        %1329 = vmatpush1.msra.mxu0 0.0
        %1330 = vmatprep.subr.mxu0 0.0
        %1331 = vmatpush1.msra.mxu0 0.0
        %1332 = vmatprep.subr.mxu0 0.0
        %1333 = vmatpush1.msra.mxu0 0.0
        %1334 = vmatprep.subr.mxu0 0.0
        %1335 = vmatpush1.msra.mxu0 0.0
        %1336 = vmatprep.subr.mxu0 0.0
        %1337 = vmatpush1.msra.mxu0 0.0
        %1338 = vmatprep.subr.mxu0 0.0
        %1339 = vmatpush1.msra.mxu0 0.0
        %1340 = vmatprep.mubr.f32.mxu0 0.0
        %1341 = vmatmul.mubr.f32.gmra.mrb[0].mxu0 %v1274
        %v1342 = vpop.f32.mrb[0].mxu0
        %v1343 = vadd.f32 0.0, %v1342
        %v1344 = vpop.f32.mrb[0].mxu0
        %1345 = vdwg.mxu0
        %v1347 = vrot.slane %v1343, 2
        %v1349 = vadd.f32 %v1121, %v1347
        %v1350 = vxor.u32 %v1349, 2147483648
        %v1351 = vmul.f32 %v1350, 1.442695
        %v1352 = vpow.pop %v1351
        %v1353 = vadd.f32 %v1352, 1.0
        %v1354 = vrcp.pop %v1353
        %v1355 = vmul.f32 1.0, %v1354
        %v1356 = vtanh.pop %v1349
        %v1358 = vrot.slane %v1258, 6
        %v1360 = vmul.f32 %v1355, %v1358
        %1362 = vrot.lane.b32.xlu0 %v1356, 64
        %v1363 = vpop.permute.xlu0 %1362
        %v1365 = vmul.f32 %v1355, %v1363
        %1367 = vrot.lane.b32.xlu0 %v1365, 32
        %v1368 = vpop.permute.xlu0 %1367
        %v1370 = vadd.f32 %v1360, %v1368
        %v1371 = vtanh.pop %v1370
        %1373 = vrot.lane.b32.xlu0 %v1371, 64
        %v1374 = vpop.permute.xlu0 %1373
        %v1376 = vmul.f32 %v1355, %v1374
        %1378 = vrot.lane.b32.xlu0 %v1376, 32
        %v1379 = vpop.permute.xlu0 %1378
        %1381 = vst.msk [vmem:[#allocation2 + $0x8] sm:$0xc0] %vm930, %v1379
        %1382 = vst.msk [vmem:[#allocation2 - $0x6] sm:$0xc0] %vm932, %v1379
        %v1383 = vld [vmem:[#allocation2] sm:$0xff]
        %v1384 = vld [vmem:[#allocation2 + $0x8] sm:$0xff]
        %v1385 = vld [vmem:[%s354] sm:$0xff]
        %v1386 = vld [vmem:[%s354 + $0x8] sm:$0xff]
        %v1387 = vld [vmem:[%s354 + $0x10] sm:$0xff]
        %v1388 = vld [vmem:[%s354 + $0x18] sm:$0xff]
        %v1389 = vld [vmem:[%s357] sm:$0x1]
        %v1391 = vlaneseq
        %v1392 = vshrl.u32 %v1391, 7
        %v1393 = vsub.s32 0, %v1392
        %v1394 = vrot.slane %v1389, %v1393
        %v1397 = vsel %vm481, %v1383, 0
        %v1400 = vsel %vm481, %v1384, 0
        %1402 = vmatprep.subr.mxu0 0.0
        %1403 = vmatpush1.msra.mxu0 %v1385
        %1404 = vmatprep.subr.mxu0 0.0
        %1405 = vmatpush1.msra.mxu0 %v1386
        %1406 = vmatprep.subr.mxu0 0.0
        %1407 = vmatpush1.msra.mxu0 %v1387
        %1408 = vmatprep.subr.mxu0 0.0
        %1409 = vmatpush1.msra.mxu0 %v1388
        %1410 = vmatprep.subr.mxu0 0.0
        %1411 = vmatpush1.msra.mxu0 0.0
        %1412 = vmatprep.subr.mxu0 0.0
        %1413 = vmatpush1.msra.mxu0 0.0
        %1414 = vmatprep.subr.mxu0 0.0
        %1415 = vmatpush1.msra.mxu0 0.0
        %1416 = vmatprep.subr.mxu0 0.0
        %1417 = vmatpush1.msra.mxu0 0.0
        %1418 = vmatprep.subr.mxu0 0.0
        %1419 = vmatpush1.msra.mxu0 0.0
        %1420 = vmatprep.subr.mxu0 0.0
        %1421 = vmatpush1.msra.mxu0 0.0
        %1422 = vmatprep.subr.mxu0 0.0
        %1423 = vmatpush1.msra.mxu0 0.0
        %1424 = vmatprep.subr.mxu0 0.0
        %1425 = vmatpush1.msra.mxu0 0.0
        %1426 = vmatprep.subr.mxu0 0.0
        %1427 = vmatpush1.msra.mxu0 0.0
        %1428 = vmatprep.subr.mxu0 0.0
        %1429 = vmatpush1.msra.mxu0 0.0
        %1430 = vmatprep.subr.mxu0 0.0
        %1431 = vmatpush1.msra.mxu0 0.0
        %1432 = vmatprep.subr.mxu0 0.0
        %1433 = vmatpush1.msra.mxu0 0.0
        %1434 = vmatprep.subr.mxu0 0.0
        %1435 = vmatpush1.msra.mxu0 0.0
        %1436 = vmatprep.subr.mxu0 0.0
        %1437 = vmatpush1.msra.mxu0 0.0
        %1438 = vmatprep.subr.mxu0 0.0
        %1439 = vmatpush1.msra.mxu0 0.0
        %1440 = vmatprep.subr.mxu0 0.0
        %1441 = vmatpush1.msra.mxu0 0.0
        %1442 = vmatprep.subr.mxu0 0.0
        %1443 = vmatpush1.msra.mxu0 0.0
        %1444 = vmatprep.subr.mxu0 0.0
        %1445 = vmatpush1.msra.mxu0 0.0
        %1446 = vmatprep.subr.mxu0 0.0
        %1447 = vmatpush1.msra.mxu0 0.0
        %1448 = vmatprep.subr.mxu0 0.0
        %1449 = vmatpush1.msra.mxu0 0.0
        %1450 = vmatprep.subr.mxu0 0.0
        %1451 = vmatpush1.msra.mxu0 0.0
        %1452 = vmatprep.subr.mxu0 0.0
        %1453 = vmatpush1.msra.mxu0 0.0
        %1454 = vmatprep.subr.mxu0 0.0
        %1455 = vmatpush1.msra.mxu0 0.0
        %1456 = vmatprep.subr.mxu0 0.0
        %1457 = vmatpush1.msra.mxu0 0.0
        %1458 = vmatprep.subr.mxu0 0.0
        %1459 = vmatpush1.msra.mxu0 0.0
        %1460 = vmatprep.subr.mxu0 0.0
        %1461 = vmatpush1.msra.mxu0 0.0
        %1462 = vmatprep.subr.mxu0 0.0
        %1463 = vmatpush1.msra.mxu0 0.0
        %1464 = vmatprep.subr.mxu0 0.0
        %1465 = vmatpush1.msra.mxu0 0.0
        %1466 = vmatprep.mubr.f32.mxu0 0.0
        %1467 = vmatmul.mubr.f32.gmra.mrb[0].mxu0 %v1397
        %v1468 = vpop.f32.mrb[0].mxu0
        %v1469 = vadd.f32 %v1394, %v1468
        %v1470 = vpop.f32.mrb[0].mxu0
        %1471 = vmatprep.mubr.f32.mxu0 0.0
        %1472 = vmatmul.mubr.f32.gmra.mrb[0].mxu0 %v1400
        %v1473 = vpop.f32.mrb[0].mxu0
        %v1474 = vadd.f32 %v1394, %v1473
        %v1475 = vpop.f32.mrb[0].mxu0
        %1476 = vdwg.mxu0
        %vm1477 = vcmask 130048
        %1478 = vst.msk [vmem:[%s362] sm:$0xff] %vm1477, %v1469
        %1479 = vst.msk [vmem:[%s362 + $0x8] sm:$0xff] %vm1477, %v1474
        %p1480 = scmp.lt.s32.totalorder %s20, 2
        %s1481 = scalar_select %p1480, %s20, 2
        %s1482 = smul.addr %s1481, 2
        %s1483 = smul.addr %s1482, 8
        %s1484 = scalar_lea.vmem %s6, %s1483
        // Predicated region
        $region49: #{f_att_forward.2} parent=43 // pred_check
          %p1485 = pneg %p194
        $region50: #{f_att_forward.2} parent=43 // pred_check_branch
          %1487 = sbr.rel (%p1485) target = $region52
        $region51: #{f_att_forward.2} parent=43 // pred_region
          _
        $region52: #{f_att_forward.2} parent=43 // pred_fallthru
          _
      $region44: #{f_att_forward.2} parent=5 // pred_fallthru
        _
      %p1488 = scmp.le.s32.totalorder 2, %s15
      // Predicated region
      $region53: #{f_att_forward.2} parent=5 // pred_check
        %p1489 = pneg %p1488
      $region54: #{f_att_forward.2} parent=5 // pred_check_branch
        %1491 = sbr.rel (%p1489) target = $region56
      $region55: #{f_att_forward.2} parent=5 // pred_region
        %s1492 = ssub.s32 %s15, 2
        // Predicated region
        $region57: #{f_att_forward.2} parent=55 // pred_check
          %p1493 = pneg %p200
        $region58: #{f_att_forward.2} parent=55 // pred_check_branch
          %1495 = sbr.rel (%p1493) target = $region60
        $region59: #{f_att_forward.2} parent=55 // pred_region
          %p1496 = scmp.lt.s32.totalorder %s21, 2
          %s1497 = scalar_select %p1496, %s21, 2
          %s1498 = smul.addr %s1497, 2
          %s1499 = smul.addr %s1498, 8
          %s1500 = scalar_lea.vmem %s6, %s1499
        $region60: #{f_att_forward.2} parent=55 // pred_fallthru
          _
      $region56: #{f_att_forward.2} parent=5 // pred_fallthru
        _
    $region6: #{f_att_forward.2} parent=1 // loop_footer
      %s19 = sadd.s32 1, %s15
    $region7: #{f_att_forward.2} parent=1 // loop_footer_branch
      %14 = sbr.rel target = $region3
    $region8: #{f_att_forward.2} parent=1 // loop_exit
      _
    %1501 = vsyncpa [#allocation4], 1
    %s1502 = scalar_lea.sflag [#allocation4], 1
    %1503 = vsyncpa %s1502, 1

// kernel: f_att_forward.3
$region0: #{f_att_forward.3}
  #allocation0 [shape = 'u32[]', space=smem, size = 0x4, offset = 0x4, fixed_abs, tag = 'smem constant byte address 0x4 - core index']
  #allocation1 [shape = 'u32[144,128]{1,0:T(1,128)}', space=vmem, size = 0x12000, scoped, tag = 'internal scratch']
  %s0 = inlined_call_operand.vmem [shape: f32[3,16,16], index: 0, kind: input, shape index: {}]
  %s1 = inlined_call_operand.vmem [shape: f32[16,16], index: 1, kind: output, shape index: {}]
  %s2 = sld [smem:[#allocation0]]
  $region14: #{f_att_forward.3} parent=0
    _
  %s4 = ssub.s32 1, %s2
  %s5 = scalar_select 0, %s4, %s2
  // Predicated region
  $region2: #{f_att_forward.3} parent=0 // pred_check
    _
  $region3: #{f_att_forward.3} parent=0 // pred_check_branch
    %7 = sbr.rel (0) target = $region5
  $region4: #{f_att_forward.3} parent=0 // pred_region
    _
  $region5: #{f_att_forward.3} parent=0 // pred_fallthru
    _
  %v8 = vld [vmem:[%s0] sm:$0xff]
  %v9 = vld [vmem:[%s0 + $0x8] sm:$0xff]
  %s10 = scalar_lea.vmem %s0, 16
  %v11 = vld [vmem:[%s10] sm:$0xff]
  %v12 = vld [vmem:[%s10 + $0x8] sm:$0xff]
  %s13 = scalar_lea.vmem %s0, 32
  %v14 = vld [vmem:[%s13] sm:$0xff]
  %v15 = vld [vmem:[%s13 + $0x8] sm:$0xff]
  %vm16 = vcmask 130048
  %v18 = vsel %vm16, %v8, 0
  %v21 = vsel %vm16, %v9, 0
  %v24 = vsel %vm16, %v11, 0
  %v27 = vsel %vm16, %v12, 0
  %29 = vmatprep.subr.mxu0 0.0
  %30 = vmatpush1.xpose.msra.mxu0 %v24
  %31 = vmatprep.subr.mxu0 0.0
  %32 = vmatpush1.xpose.msra.mxu0 %v27
  %33 = vmatprep.subr.mxu0 0.0
  %34 = vmatpush1.xpose.msra.mxu0 0.0
  %35 = vmatprep.subr.mxu0 0.0
  %36 = vmatpush1.xpose.msra.mxu0 0.0
  %37 = vmatprep.subr.mxu0 0.0
  %38 = vmatpush1.xpose.msra.mxu0 0.0
  %39 = vmatprep.subr.mxu0 0.0
  %40 = vmatpush1.xpose.msra.mxu0 0.0
  %41 = vmatprep.subr.mxu0 0.0
  %42 = vmatpush1.xpose.msra.mxu0 0.0
  %43 = vmatprep.subr.mxu0 0.0
  %44 = vmatpush1.xpose.msra.mxu0 0.0
  %45 = vmatprep.subr.mxu0 0.0
  %46 = vmatpush1.xpose.msra.mxu0 0.0
  %47 = vmatprep.subr.mxu0 0.0
  %48 = vmatpush1.xpose.msra.mxu0 0.0
  %49 = vmatprep.subr.mxu0 0.0
  %50 = vmatpush1.xpose.msra.mxu0 0.0
  %51 = vmatprep.subr.mxu0 0.0
  %52 = vmatpush1.xpose.msra.mxu0 0.0
  %53 = vmatprep.subr.mxu0 0.0
  %54 = vmatpush1.xpose.msra.mxu0 0.0
  %55 = vmatprep.subr.mxu0 0.0
  %56 = vmatpush1.xpose.msra.mxu0 0.0
  %57 = vmatprep.subr.mxu0 0.0
  %58 = vmatpush1.xpose.msra.mxu0 0.0
  %59 = vmatprep.subr.mxu0 0.0
  %60 = vmatpush1.xpose.msra.mxu0 0.0
  %61 = vmatprep.subr.mxu0 0.0
  %62 = vmatpush1.xpose.msra.mxu0 0.0
  %63 = vmatprep.subr.mxu0 0.0
  %64 = vmatpush1.xpose.msra.mxu0 0.0
  %65 = vmatprep.subr.mxu0 0.0
  %66 = vmatpush1.xpose.msra.mxu0 0.0
  %67 = vmatprep.subr.mxu0 0.0
  %68 = vmatpush1.xpose.msra.mxu0 0.0
  %69 = vmatprep.subr.mxu0 0.0
  %70 = vmatpush1.xpose.msra.mxu0 0.0
  %71 = vmatprep.subr.mxu0 0.0
  %72 = vmatpush1.xpose.msra.mxu0 0.0
  %73 = vmatprep.subr.mxu0 0.0
  %74 = vmatpush1.xpose.msra.mxu0 0.0
  %75 = vmatprep.subr.mxu0 0.0
  %76 = vmatpush1.xpose.msra.mxu0 0.0
  %77 = vmatprep.subr.mxu0 0.0
  %78 = vmatpush1.xpose.msra.mxu0 0.0
  %79 = vmatprep.subr.mxu0 0.0
  %80 = vmatpush1.xpose.msra.mxu0 0.0
  %81 = vmatprep.subr.mxu0 0.0
  %82 = vmatpush1.xpose.msra.mxu0 0.0
  %83 = vmatprep.subr.mxu0 0.0
  %84 = vmatpush1.xpose.msra.mxu0 0.0
  %85 = vmatprep.subr.mxu0 0.0
  %86 = vmatpush1.xpose.msra.mxu0 0.0
  %87 = vmatprep.subr.mxu0 0.0
  %88 = vmatpush1.xpose.msra.mxu0 0.0
  %89 = vmatprep.subr.mxu0 0.0
  %90 = vmatpush1.xpose.msra.mxu0 0.0
  %91 = vmatprep.subr.mxu0 0.0
  %92 = vmatpush1.xpose.msra.mxu0 0.0
  %93 = vmatprep.mubr.f32.mxu0 0.0
  %94 = vmatmul.mubr.f32.gmra.mrb[0].mxu0 %v18
  %v95 = vpop.f32.mrb[0].mxu0
  %v96 = vadd.f32 0.0, %v95
  %v97 = vpop.f32.mrb[0].mxu0
  %98 = vmatprep.mubr.f32.mxu0 0.0
  %99 = vmatmul.mubr.f32.gmra.mrb[0].mxu0 %v21
  %v100 = vpop.f32.mrb[0].mxu0
  %v101 = vadd.f32 0.0, %v100
  %v102 = vpop.f32.mrb[0].mxu0
  %103 = vdwg.mxu0
  %v104 = vmul.f32 %v96, 0.25
  %v105 = vmul.f32 %v101, 0.25
  %v106 = vlaneseq
  %v107 = vshrl.u32 %v106, 7
  %v108 = vadd.s32 %v107, 8
  %vm109 = vcmp.lt.s32.totalorder %v107, 0
  %v110 = vsub.s32 0, %v107
  %v111 = vsel %vm109, %v110, %v107
  %v112 = vshrl.u32 %v111, 1
  %v113 = vand.u32 %v111, 1
  %v114 = vsub.s32 0, %v113
  %v115 = vsel %vm109, %v114, %v113
  %vm116 = vcmp.lt.s32.totalorder %v108, 0
  %v117 = vsub.s32 0, %v108
  %v118 = vsel %vm116, %v117, %v108
  %v119 = vshrl.u32 %v118, 1
  %v120 = vand.u32 %v118, 1
  %v121 = vsub.s32 0, %v120
  %v122 = vsel %vm116, %v121, %v120
  %vm123 = vcmp.ne.s32.totalorder %v115, 0
  %vm124 = vcmp.ne.s32.totalorder %v122, 0
  %vm125 = vcmp.lt.s32.totalorder %v115, 0
  %vm126 = vcmp.lt.s32.totalorder %v122, 0
  %vm127 = vmand %vm125, %vm123
  %vm128 = vmand %vm126, %vm124
  %v129 = vadd.s32 %v115, 2
  %v130 = vadd.s32 %v122, 2
  %v131 = vsel %vm127, %v129, %v115
  %v132 = vsel %vm128, %v130, %v122
  %v133 = vlaneseq
  %v134 = vand.u32 %v133, 127
  %vm135 = vcmp.lt.s32.totalorder %v134, 0
  %v136 = vsub.s32 0, %v134
  %v137 = vsel %vm135, %v136, %v134
  %v138 = vshrl.u32 %v137, 1
  %v139 = vand.u32 %v137, 1
  %v140 = vsub.s32 0, %v139
  %v141 = vsel %vm135, %v140, %v139
  %vm142 = vcmp.ne.s32.totalorder %v141, 0
  %vm143 = vcmp.lt.s32.totalorder %v141, 0
  %vm144 = vmand %vm143, %vm142
  %v145 = vadd.s32 %v141, 2
  %v146 = vsel %vm144, %v145, %v141
  %vm147 = vcmp.eq.s32.totalorder %v131, %v146
  %vm148 = vcmp.eq.s32.totalorder %v132, %v146
  %v149 = vsel %vm147, %v104, -1e+30
  %v150 = vsel %vm148, %v105, -1e+30
  %v151 = vsel %vm16, %v149, -inf
  %152 = vmax.xlane.f32.xlu0 %v151
  %v153 = vpop.xlane.xlu0 %152
  %v154 = vsel %vm16, %v150, -inf
  %155 = vmax.xlane.f32.xlu0 %v154
  %v156 = vpop.xlane.xlu0 %155
  %v157 = vsub.f32 %v149, %v153
  %v158 = vsub.f32 %v150, %v156
  %v159 = vmul.f32 %v157, 1.442695
  %v160 = vpow.pop %v159
  %v161 = vmul.f32 %v158, 1.442695
  %v162 = vpow.pop %v161
  %v163 = vsel %vm16, %v160, 0.0
  %164 = vadd.xlane.f32.xlu0 %v163
  %v165 = vpop.xlane.xlu0 %164
  %v166 = vsel %vm16, %v162, 0.0
  %167 = vadd.xlane.f32.xlu0 %v166
  %v168 = vpop.xlane.xlu0 %167
  %v169 = vrcp.pop %v165
  %v170 = vrcp.pop %v168
  %v171 = vmul.f32 %v160, %v169
  %v172 = vmul.f32 %v162, %v170
  %v174 = vsel %vm16, %v171, 0
  %v177 = vsel %vm16, %v172, 0
  %179 = vmatprep.subr.mxu0 0.0
  %180 = vmatpush1.msra.mxu0 %v14
  %181 = vmatprep.subr.mxu0 0.0
  %182 = vmatpush1.msra.mxu0 %v15
  %183 = vmatprep.subr.mxu0 0.0
  %184 = vmatpush1.msra.mxu0 0.0
  %185 = vmatprep.subr.mxu0 0.0
  %186 = vmatpush1.msra.mxu0 0.0
  %187 = vmatprep.subr.mxu0 0.0
  %188 = vmatpush1.msra.mxu0 0.0
  %189 = vmatprep.subr.mxu0 0.0
  %190 = vmatpush1.msra.mxu0 0.0
  %191 = vmatprep.subr.mxu0 0.0
  %192 = vmatpush1.msra.mxu0 0.0
  %193 = vmatprep.subr.mxu0 0.0
  %194 = vmatpush1.msra.mxu0 0.0
  %195 = vmatprep.subr.mxu0 0.0
  %196 = vmatpush1.msra.mxu0 0.0
  %197 = vmatprep.subr.mxu0 0.0
  %198 = vmatpush1.msra.mxu0 0.0
  %199 = vmatprep.subr.mxu0 0.0
  %200 = vmatpush1.msra.mxu0 0.0
  %201 = vmatprep.subr.mxu0 0.0
  %202 = vmatpush1.msra.mxu0 0.0
  %203 = vmatprep.subr.mxu0 0.0
  %204 = vmatpush1.msra.mxu0 0.0
  %205 = vmatprep.subr.mxu0 0.0
  %206 = vmatpush1.msra.mxu0 0.0
  %207 = vmatprep.subr.mxu0 0.0
  %208 = vmatpush1.msra.mxu0 0.0
  %209 = vmatprep.subr.mxu0 0.0
  %210 = vmatpush1.msra.mxu0 0.0
  %211 = vmatprep.subr.mxu0 0.0
  %212 = vmatpush1.msra.mxu0 0.0
  %213 = vmatprep.subr.mxu0 0.0
  %214 = vmatpush1.msra.mxu0 0.0
  %215 = vmatprep.subr.mxu0 0.0
  %216 = vmatpush1.msra.mxu0 0.0
  %217 = vmatprep.subr.mxu0 0.0
  %218 = vmatpush1.msra.mxu0 0.0
  %219 = vmatprep.subr.mxu0 0.0
  %220 = vmatpush1.msra.mxu0 0.0
  %221 = vmatprep.subr.mxu0 0.0
  %222 = vmatpush1.msra.mxu0 0.0
  %223 = vmatprep.subr.mxu0 0.0
  %224 = vmatpush1.msra.mxu0 0.0
  %225 = vmatprep.subr.mxu0 0.0
  %226 = vmatpush1.msra.mxu0 0.0
  %227 = vmatprep.subr.mxu0 0.0
  %228 = vmatpush1.msra.mxu0 0.0
  %229 = vmatprep.subr.mxu0 0.0
  %230 = vmatpush1.msra.mxu0 0.0
  %231 = vmatprep.subr.mxu0 0.0
  %232 = vmatpush1.msra.mxu0 0.0
  %233 = vmatprep.subr.mxu0 0.0
  %234 = vmatpush1.msra.mxu0 0.0
  %235 = vmatprep.subr.mxu0 0.0
  %236 = vmatpush1.msra.mxu0 0.0
  %237 = vmatprep.subr.mxu0 0.0
  %238 = vmatpush1.msra.mxu0 0.0
  %239 = vmatprep.subr.mxu0 0.0
  %240 = vmatpush1.msra.mxu0 0.0
  %241 = vmatprep.subr.mxu0 0.0
  %242 = vmatpush1.msra.mxu0 0.0
  %243 = vmatprep.mubr.f32.mxu0 0.0
  %244 = vmatmul.mubr.f32.gmra.mrb[0].mxu0 %v174
  %v245 = vpop.f32.mrb[0].mxu0
  %v246 = vadd.f32 0.0, %v245
  %v247 = vpop.f32.mrb[0].mxu0
  %248 = vmatprep.mubr.f32.mxu0 0.0
  %249 = vmatmul.mubr.f32.gmra.mrb[0].mxu0 %v177
  %v250 = vpop.f32.mrb[0].mxu0
  %v251 = vadd.f32 0.0, %v250
  %v252 = vpop.f32.mrb[0].mxu0
  %253 = vdwg.mxu0
  %254 = vst.msk [vmem:[%s1] sm:$0xff] %vm16, %v246
  %255 = vst.msk [vmem:[%s1 + $0x8] sm:$0xff] %vm16, %v251
  // Predicated region
  $region6: #{f_att_forward.3} parent=0 // pred_check
    _
  $region7: #{f_att_forward.3} parent=0 // pred_check_branch
    %257 = sbr.rel (0) target = $region9
  $region8: #{f_att_forward.3} parent=0 // pred_region
    _
  $region9: #{f_att_forward.3} parent=0 // pred_fallthru
    _
  // Predicated region
  $region10: #{f_att_forward.3} parent=0 // pred_check
    _
  $region11: #{f_att_forward.3} parent=0 // pred_check_branch
    %259 = sbr.rel (0) target = $region13
  $region12: #{f_att_forward.3} parent=0 // pred_region
    _
  $region13: #{f_att_forward.3} parent=0 // pred_fallthru
    _

</llo_original>
